<compile_context>
chip_gen: v7x
topology: tpu7x:2x2x1
jax: 0.10.0
libtpu: 0.0.40
codegen_flags: <defaults>
</compile_context>

<pallas_src>
import jax
import jax.numpy as jnp
from jax.experimental import pallas as pl
from jax.experimental.pallas import tpu as pltpu

N_NODES = 64                         # nodes per graph (small example size)
PAD = 128                            # feature dims zero-padded to 128 lanes
F_IN, F_H0, F_H1, F_OUT = 1, 100, 10, 1   # GraphConv(1,100) -> (100,10) -> (10,1)
TB = 4                               # graphs stacked block-diagonally per grid step
M_TILE = TB * N_NODES                # 256 node rows per grid step


def _leaky_relu(x, slope=0.01):      # PyTorch F.leaky_relu default slope
    return jnp.where(x > 0, x, slope * x)


def gcn2_kernel(a_ref, x_ref, w0_ref, b0_ref, w1_ref, b1_ref, w2_ref, b2_ref, o_ref):
    a = a_ref[...]                   # [M_TILE, M_TILE] bf16 block-diag adjacency
    h = x_ref[...]                   # [M_TILE, PAD]    bf16 padded input features

    # ---- GraphConv(1, 100): A_hat @ X @ W0 + b0, leaky_relu ----
    h = jnp.dot(a, h, preferred_element_type=jnp.float32)
    h = jnp.dot(h.astype(jnp.bfloat16), w0_ref[...],
                preferred_element_type=jnp.float32) + b0_ref[...]
    h = _leaky_relu(h)

    # ---- GraphConv(100, 10): A_hat @ H @ W1 + b1, relu ----
    h = jnp.dot(a, h.astype(jnp.bfloat16), preferred_element_type=jnp.float32)
    h = jnp.dot(h.astype(jnp.bfloat16), w1_ref[...],
                preferred_element_type=jnp.float32) + b1_ref[...]
    h = jnp.maximum(h, 0.0)

    # ---- GraphConv(10, 1): A_hat @ H @ W2 + b2, relu ----
    h = jnp.dot(a, h.astype(jnp.bfloat16), preferred_element_type=jnp.float32)
    h = jnp.dot(h.astype(jnp.bfloat16), w2_ref[...],
                preferred_element_type=jnp.float32) + b2_ref[...]
    o_ref[...] = jnp.maximum(h, 0.0)


def _pad2(x, rows, cols, dtype):
    out = jnp.zeros((rows, cols), jnp.float32)
    out = out.at[: x.shape[0], : x.shape[1]].set(x.astype(jnp.float32))
    return out.astype(dtype)


def prepare_params(params):
    """Pad params to 128 lanes and cast to MXU dtypes ONCE (hoisted out of forward)."""
    (w0, b0), (w1, b1), (w2, b2) = params
    return (
        _pad2(w0, PAD, PAD, jnp.bfloat16), _pad2(b0[None, :], 1, PAD, jnp.float32),
        _pad2(w1, PAD, PAD, jnp.bfloat16), _pad2(b1[None, :], 1, PAD, jnp.float32),
        _pad2(w2, PAD, PAD, jnp.bfloat16), _pad2(b2[None, :], 1, PAD, jnp.float32),
    )


def prepare_inputs(a_hat, in_feat):
    """a_hat: [B, N, N]; in_feat: [B, N, 1].  Stack TB graphs block-diagonally
    so each grid step sees a single [TB*N, TB*N] adjacency and [TB*N, PAD] features."""
    B, n, _ = a_hat.shape
    assert B % TB == 0 and n == N_NODES
    num_tiles = B // TB
    m = TB * n

    a_blk = jnp.zeros((num_tiles, m, m), jnp.float32)
    a_tiles = a_hat.reshape(num_tiles, TB, n, n)
    for j in range(TB):
        a_blk = a_blk.at[:, j * n:(j + 1) * n, j * n:(j + 1) * n].set(a_tiles[:, j])

    x_blk = jnp.zeros((B, n, PAD), jnp.float32)
    x_blk = x_blk.at[:, :, :F_IN].set(in_feat)
    x_blk = x_blk.reshape(num_tiles, m, PAD)

    return a_blk.astype(jnp.bfloat16), x_blk.astype(jnp.bfloat16)


@jax.jit
def gcn2_forward(a_blk, x_blk, padded_params):
    """a_blk: [T, M_TILE, M_TILE] bf16 block-diag adjacency; x_blk: [T, M_TILE, PAD] bf16."""
    num_tiles, m, _ = a_blk.shape
    w0, b0, w1, b1, w2, b2 = padded_params

    flops_per_tile = 3 * 2 * m * m * PAD + 3 * 2 * m * PAD * PAD
    bytes_accessed = (num_tiles * (m * m * 2 + m * PAD * 2 + m * PAD * 4)
                      + 3 * PAD * PAD * 2 + 3 * PAD * 4)

    out = pl.pallas_call(
        gcn2_kernel,
        out_shape=jax.ShapeDtypeStruct((num_tiles, m, PAD), jnp.float32),
        grid=(num_tiles,),
        in_specs=[
            pl.BlockSpec((None, m, m), lambda g: (g, 0, 0)),      # A (block-diag, per tile)
            pl.BlockSpec((None, m, PAD), lambda g: (g, 0, 0)),    # X (per tile)
            pl.BlockSpec((PAD, PAD), lambda g: (0, 0)),           # W0 (shared)
            pl.BlockSpec((1, PAD), lambda g: (0, 0)),             # b0
            pl.BlockSpec((PAD, PAD), lambda g: (0, 0)),           # W1
            pl.BlockSpec((1, PAD), lambda g: (0, 0)),             # b1
            pl.BlockSpec((PAD, PAD), lambda g: (0, 0)),           # W2
            pl.BlockSpec((1, PAD), lambda g: (0, 0)),             # b2
        ],
        out_specs=pl.BlockSpec((None, m, PAD), lambda g: (g, 0, 0)),
        compiler_params=pltpu.CompilerParams(
            dimension_semantics=("parallel",)),
        cost_estimate=pl.CostEstimate(
            flops=num_tiles * flops_per_tile,
            transcendentals=0,
            bytes_accessed=bytes_accessed),
    )(a_blk, x_blk, w0, b0, w1, b1, w2, b2)
    return out                                   # [T, M_TILE, PAD]


def gcn2_reference(a_hat, x, params):
    """Pure-JAX f32 reference for one graph."""
    (w0, b0), (w1, b1), (w2, b2) = params
    h = _leaky_relu(a_hat @ x @ w0 + b0)
    h = jnp.maximum(a_hat @ h @ w1 + b1, 0.0)
    h = jnp.maximum(a_hat @ h @ w2 + b2, 0.0)
    return h


def make_params(key):
    """Deterministic Glorot-uniform weights, zero biases (DGL GraphConv init)."""
    def glorot(k, fan_in, fan_out):
        limit = (6.0 / (fan_in + fan_out)) ** 0.5
        return jax.random.uniform(k, (fan_in, fan_out), jnp.float32, -limit, limit)

    k0, k1, k2 = jax.random.split(key, 3)
    return (
        (glorot(k0, F_IN, F_H0), jnp.zeros((F_H0,), jnp.float32)),
        (glorot(k1, F_H0, F_H1), jnp.zeros((F_H1,), jnp.float32)),
        (glorot(k2, F_H1, F_OUT), jnp.zeros((F_OUT,), jnp.float32)),
    )


def make_graph(key, n):
    """Random symmetric graph with self-loops; return D^{-1/2} A D^{-1/2}."""
    upper = (jax.random.uniform(key, (n, n)) < 0.2).astype(jnp.float32)
    adj = jnp.triu(upper, 1)
    adj = adj + adj.T + jnp.eye(n, dtype=jnp.float32)
    deg = jnp.maximum(adj.sum(axis=1), 1.0)          # clamp(min=1) like DGL
    d_inv_sqrt = deg ** -0.5
    return adj * d_inv_sqrt[:, None] * d_inv_sqrt[None, :]


if __name__ == "__main__":
    key = jax.random.PRNGKey(0)
    k_graph, k_feat, k_param = jax.random.split(key, 3)

    B = 8                                            # 8 graphs -> 2 grid steps of TB=4
    graph_keys = jax.random.split(k_graph, B)
    a_hat = jnp.stack([make_graph(k, N_NODES) for k in graph_keys])          # [8, 64, 64]
    in_feat = jax.random.normal(k_feat, (B, N_NODES, F_IN), jnp.float32)     # [8, 64, 1]

    params = make_params(k_param)
    padded_params = prepare_params(params)           # once, outside the hot path
    a_blk, x_blk = prepare_inputs(a_hat, in_feat)

    out_p = gcn2_forward(a_blk, x_blk, padded_params)
    jax.block_until_ready(out_p)
    out = out_p.reshape(B, N_NODES, PAD)[:, :, :F_OUT]                       # [8, 64, 1]

    # Compare against the pure-JAX f32 reference (loose tolerance: kernel uses
    # bf16 MXU inputs with f32 accumulation).
    ref = jax.vmap(lambda a, x: gcn2_reference(a, x, params))(a_hat, in_feat)
    err = float(jnp.max(jnp.abs(out - ref)))

    assert out.shape == (B, N_NODES, F_OUT) and out.dtype == jnp.float32
    assert bool(jnp.isfinite(out).all())
    assert err < 5e-2, f"max abs error {err}"
    print("KERNEL_OK")
</pallas_src>

<mosaic_0001>
module attributes {stable_mosaic.version = 11 : i64} {
  func.func @gcn2_kernel(%arg0: i32, %arg1: memref<1x256x256xbf16, #tpu.memory_space<vmem>>, %arg2: memref<1x256x128xbf16, #tpu.memory_space<vmem>>, %arg3: memref<128x128xbf16, #tpu.memory_space<vmem>>, %arg4: memref<1x128xf32, #tpu.memory_space<vmem>>, %arg5: memref<128x128xbf16, #tpu.memory_space<vmem>>, %arg6: memref<1x128xf32, #tpu.memory_space<vmem>>, %arg7: memref<128x128xbf16, #tpu.memory_space<vmem>>, %arg8: memref<1x128xf32, #tpu.memory_space<vmem>>, %arg9: memref<1x256x128xf32, #tpu.memory_space<vmem>>) attributes {dimension_semantics = [#tpu.dimension_semantics<parallel>], iteration_bounds = array<i64: 2>, scalar_prefetch = 0 : i64, scratch_operands = 0 : i64, tpu.core_type = #tpu.core_type<tc>, window_params = [{transform_indices = @transform_0, window_bounds = array<i64: 1, 256, 256>}, {transform_indices = @transform_1, window_bounds = array<i64: 1, 256, 128>}, {pipeline_mode = #tpu.pipeline_mode<synchronous>, transform_indices = @transform_2, window_bounds = array<i64: 128, 128>}, {pipeline_mode = #tpu.pipeline_mode<synchronous>, transform_indices = @transform_3, window_bounds = array<i64: 1, 128>}, {pipeline_mode = #tpu.pipeline_mode<synchronous>, transform_indices = @transform_4, window_bounds = array<i64: 128, 128>}, {pipeline_mode = #tpu.pipeline_mode<synchronous>, transform_indices = @transform_5, window_bounds = array<i64: 1, 128>}, {pipeline_mode = #tpu.pipeline_mode<synchronous>, transform_indices = @transform_6, window_bounds = array<i64: 128, 128>}, {pipeline_mode = #tpu.pipeline_mode<synchronous>, transform_indices = @transform_7, window_bounds = array<i64: 1, 128>}, {transform_indices = @transform_8, window_bounds = array<i64: 1, 256, 128>}]} {
    %c0 = arith.constant 0 : index
    %c0_0 = arith.constant 0 : index
    %c0_1 = arith.constant 0 : index
    %0 = vector.load %arg1[%c0, %c0_0, %c0_1] : memref<1x256x256xbf16, #tpu.memory_space<vmem>>, vector<1x256x256xbf16>
    %1 = vector.shape_cast %0 : vector<1x256x256xbf16> to vector<256x256xbf16>
    %c0_2 = arith.constant 0 : index
    %c0_3 = arith.constant 0 : index
    %c0_4 = arith.constant 0 : index
    %2 = vector.load %arg2[%c0_2, %c0_3, %c0_4] : memref<1x256x128xbf16, #tpu.memory_space<vmem>>, vector<1x256x128xbf16>
    %3 = vector.shape_cast %2 : vector<1x256x128xbf16> to vector<256x128xbf16>
    %cst = arith.constant dense<0.000000e+00> : vector<256x128xf32>
    %4 = tpu.matmul %1, %3, %cst {dimension_numbers = #tpu.dot_dimension_numbers<[1], [0], [0], [1], [0, 0, 1, 1], [], []>} : vector<256x256xbf16>, vector<256x128xbf16>, vector<256x128xf32> -> vector<256x128xf32>
    %5 = arith.truncf %4 : vector<256x128xf32> to vector<256x128xbf16>
    %c0_5 = arith.constant 0 : index
    %c0_6 = arith.constant 0 : index
    %6 = vector.load %arg3[%c0_5, %c0_6] : memref<128x128xbf16, #tpu.memory_space<vmem>>, vector<128x128xbf16>
    %cst_7 = arith.constant dense<0.000000e+00> : vector<256x128xf32>
    %7 = tpu.matmul %5, %6, %cst_7 {dimension_numbers = #tpu.dot_dimension_numbers<[1], [0], [0], [1], [0, 0, 1, 1], [], []>} : vector<256x128xbf16>, vector<128x128xbf16>, vector<256x128xf32> -> vector<256x128xf32>
    %c0_8 = arith.constant 0 : index
    %c0_9 = arith.constant 0 : index
    %8 = vector.load %arg4[%c0_8, %c0_9] : memref<1x128xf32, #tpu.memory_space<vmem>>, vector<1x128xf32>
    %9 = vector.broadcast %8 : vector<1x128xf32> to vector<256x128xf32>
    %10 = arith.addf %7, %9 : vector<256x128xf32>
    %cst_10 = arith.constant 0.000000e+00 : f32
    %11 = vector.broadcast %cst_10 : f32 to vector<256x128xf32>
    %12 = arith.cmpf ogt, %10, %11 : vector<256x128xf32>
    %cst_11 = arith.constant 0.00999999977 : f32
    %13 = vector.broadcast %cst_11 : f32 to vector<256x128xf32>
    %14 = arith.mulf %13, %10 : vector<256x128xf32>
    %15 = arith.select %12, %10, %14 : vector<256x128xi1>, vector<256x128xf32>
    %16 = arith.truncf %15 : vector<256x128xf32> to vector<256x128xbf16>
    %cst_12 = arith.constant dense<0.000000e+00> : vector<256x128xf32>
    %17 = tpu.matmul %1, %16, %cst_12 {dimension_numbers = #tpu.dot_dimension_numbers<[1], [0], [0], [1], [0, 0, 1, 1], [], []>} : vector<256x256xbf16>, vector<256x128xbf16>, vector<256x128xf32> -> vector<256x128xf32>
    %18 = arith.truncf %17 : vector<256x128xf32> to vector<256x128xbf16>
    %c0_13 = arith.constant 0 : index
    %c0_14 = arith.constant 0 : index
    %19 = vector.load %arg5[%c0_13, %c0_14] : memref<128x128xbf16, #tpu.memory_space<vmem>>, vector<128x128xbf16>
    %cst_15 = arith.constant dense<0.000000e+00> : vector<256x128xf32>
    %20 = tpu.matmul %18, %19, %cst_15 {dimension_numbers = #tpu.dot_dimension_numbers<[1], [0], [0], [1], [0, 0, 1, 1], [], []>} : vector<256x128xbf16>, vector<128x128xbf16>, vector<256x128xf32> -> vector<256x128xf32>
    %c0_16 = arith.constant 0 : index
    %c0_17 = arith.constant 0 : index
    %21 = vector.load %arg6[%c0_16, %c0_17] : memref<1x128xf32, #tpu.memory_space<vmem>>, vector<1x128xf32>
    %22 = vector.broadcast %21 : vector<1x128xf32> to vector<256x128xf32>
    %23 = arith.addf %20, %22 : vector<256x128xf32>
    %cst_18 = arith.constant 0.000000e+00 : f32
    %24 = vector.broadcast %cst_18 : f32 to vector<256x128xf32>
    %25 = arith.maximumf %23, %24 : vector<256x128xf32>
    %26 = arith.truncf %25 : vector<256x128xf32> to vector<256x128xbf16>
    %cst_19 = arith.constant dense<0.000000e+00> : vector<256x128xf32>
    %27 = tpu.matmul %1, %26, %cst_19 {dimension_numbers = #tpu.dot_dimension_numbers<[1], [0], [0], [1], [0, 0, 1, 1], [], []>} : vector<256x256xbf16>, vector<256x128xbf16>, vector<256x128xf32> -> vector<256x128xf32>
    %28 = arith.truncf %27 : vector<256x128xf32> to vector<256x128xbf16>
    %c0_20 = arith.constant 0 : index
    %c0_21 = arith.constant 0 : index
    %29 = vector.load %arg7[%c0_20, %c0_21] : memref<128x128xbf16, #tpu.memory_space<vmem>>, vector<128x128xbf16>
    %cst_22 = arith.constant dense<0.000000e+00> : vector<256x128xf32>
    %30 = tpu.matmul %28, %29, %cst_22 {dimension_numbers = #tpu.dot_dimension_numbers<[1], [0], [0], [1], [0, 0, 1, 1], [], []>} : vector<256x128xbf16>, vector<128x128xbf16>, vector<256x128xf32> -> vector<256x128xf32>
    %c0_23 = arith.constant 0 : index
    %c0_24 = arith.constant 0 : index
    %31 = vector.load %arg8[%c0_23, %c0_24] : memref<1x128xf32, #tpu.memory_space<vmem>>, vector<1x128xf32>
    %32 = vector.broadcast %31 : vector<1x128xf32> to vector<256x128xf32>
    %33 = arith.addf %30, %32 : vector<256x128xf32>
    %cst_25 = arith.constant 0.000000e+00 : f32
    %34 = vector.broadcast %cst_25 : f32 to vector<256x128xf32>
    %35 = arith.maximumf %33, %34 : vector<256x128xf32>
    %c0_26 = arith.constant 0 : index
    %c0_27 = arith.constant 0 : index
    %c0_28 = arith.constant 0 : index
    %36 = vector.load %arg9[%c0_26, %c0_27, %c0_28] : memref<1x256x128xf32, #tpu.memory_space<vmem>>, vector<1x256x128xf32>
    %37 = vector.shape_cast %36 : vector<1x256x128xf32> to vector<256x128xf32>
    %38 = vector.shape_cast %35 : vector<256x128xf32> to vector<1x256x128xf32>
    tpu.vector_store %arg9[%c0_26, %c0_27, %c0_28], %38 {strides = array<i32>} : memref<1x256x128xf32, #tpu.memory_space<vmem>>, vector<1x256x128xf32>,
    return
  }
  func.func @transform_0(%arg0: i32) -> (i32, i32, i32) {
    %c0_i32 = arith.constant 0 : i32
    %c0_i32_0 = arith.constant 0 : i32
    %c0_i32_1 = arith.constant 0 : i32
    return %arg0, %c0_i32, %c0_i32_0 : i32, i32, i32
  }
  func.func @transform_1(%arg0: i32) -> (i32, i32, i32) {
    %c0_i32 = arith.constant 0 : i32
    %c0_i32_0 = arith.constant 0 : i32
    %c0_i32_1 = arith.constant 0 : i32
    return %arg0, %c0_i32, %c0_i32_0 : i32, i32, i32
  }
  func.func @transform_2(%arg0: i32) -> (i32, i32) {
    %c0_i32 = arith.constant 0 : i32
    %c0_i32_0 = arith.constant 0 : i32
    %c0_i32_1 = arith.constant 0 : i32
    return %c0_i32, %c0_i32_0 : i32, i32
  }
  func.func @transform_3(%arg0: i32) -> (i32, i32) {
    %c0_i32 = arith.constant 0 : i32
    %c0_i32_0 = arith.constant 0 : i32
    %c0_i32_1 = arith.constant 0 : i32
    return %c0_i32, %c0_i32_0 : i32, i32
  }
  func.func @transform_4(%arg0: i32) -> (i32, i32) {
    %c0_i32 = arith.constant 0 : i32
    %c0_i32_0 = arith.constant 0 : i32
    %c0_i32_1 = arith.constant 0 : i32
    return %c0_i32, %c0_i32_0 : i32, i32
  }
  func.func @transform_5(%arg0: i32) -> (i32, i32) {
    %c0_i32 = arith.constant 0 : i32
    %c0_i32_0 = arith.constant 0 : i32
    %c0_i32_1 = arith.constant 0 : i32
    return %c0_i32, %c0_i32_0 : i32, i32
  }
  func.func @transform_6(%arg0: i32) -> (i32, i32) {
    %c0_i32 = arith.constant 0 : i32
    %c0_i32_0 = arith.constant 0 : i32
    %c0_i32_1 = arith.constant 0 : i32
    return %c0_i32, %c0_i32_0 : i32, i32
  }
  func.func @transform_7(%arg0: i32) -> (i32, i32) {
    %c0_i32 = arith.constant 0 : i32
    %c0_i32_0 = arith.constant 0 : i32
    %c0_i32_1 = arith.constant 0 : i32
    return %c0_i32, %c0_i32_0 : i32, i32
  }
  func.func @transform_8(%arg0: i32) -> (i32, i32, i32) {
    %c0_i32 = arith.constant 0 : i32
    %c0_i32_0 = arith.constant 0 : i32
    %c0_i32_1 = arith.constant 0 : i32
    return %arg0, %c0_i32, %c0_i32_0 : i32, i32, i32
  }
}

</mosaic_0001>

<llo_original>
// kernel: gcn2_forward.1
$region0: #{gcn2_forward.1}
  #allocation0 [shape = 'u32[]', space=smem, size = 0x4, offset = 0x4, fixed_abs, tag = 'smem constant byte address 0x4 - core index']
  #allocation1 [shape = 'u32[144,128]{1,0:T(1,128)}', space=vmem, size = 0x12000, scoped, tag = 'internal scratch']
  %s0 = inlined_call_operand.hbm [shape: bf16[2,256,256], index: 0, kind: input, shape index: {}]
  %s1 = inlined_call_operand.hbm [shape: bf16[2,256,128], index: 1, kind: input, shape index: {}]
  %s2 = inlined_call_operand.hbm [shape: bf16[128,128], index: 2, kind: input, shape index: {}]
  %s3 = inlined_call_operand.vmem [shape: f32[1,128], index: 3, kind: input, shape index: {}]
  %s4 = inlined_call_operand.hbm [shape: bf16[128,128], index: 4, kind: input, shape index: {}]
  %s5 = inlined_call_operand.vmem [shape: f32[1,128], index: 5, kind: input, shape index: {}]
  %s6 = inlined_call_operand.hbm [shape: bf16[128,128], index: 6, kind: input, shape index: {}]
  %s7 = inlined_call_operand.vmem [shape: f32[1,128], index: 7, kind: input, shape index: {}]
  %s8 = inlined_call_operand.hbm [shape: f32[2,256,128], index: 8, kind: output, shape index: {}]
  %s9 = sld [smem:[#allocation0]]
  $region85: #{gcn2_forward.1} parent=0
    _
  %s11 = ssub.s32 1, %s9
  %s12 = scalar_select 0, %s11, %s9
  $region1: #{gcn2_forward.1} parent=0
    #allocation2 [shape = 'u8[262144]{0}', space=vmem, size = 0x40000, scoped, tag = 'input window, operand 0']
    #allocation3 [shape = 's32[2]{0}', space=sflag, size = 0x8, scoped, tag = 'scoped memory for gcn2_forward.1']
    #allocation4 [shape = 's32[2]{0}', space=sflag, size = 0x8, scoped, tag = 'scoped memory for gcn2_forward.1']
    #allocation5 [shape = 'u8[131072]{0}', space=vmem, size = 0x20000, scoped, tag = 'input window, operand 1']
    #allocation6 [shape = 's32[2]{0}', space=sflag, size = 0x8, scoped, tag = 'scoped memory for gcn2_forward.1']
    #allocation7 [shape = 'u8[32768]{0}', space=vmem, size = 0x8000, scoped, tag = 'input window, operand 2, single buffered']
    #allocation8 [shape = 'u8[32768]{0}', space=vmem, size = 0x8000, scoped, tag = 'input window, operand 4, single buffered']
    #allocation9 [shape = 's32[1]{0}', space=sflag, size = 0x4, scoped, tag = 'scoped memory for gcn2_forward.1']
    #allocation10 [shape = 'u8[32768]{0}', space=vmem, size = 0x8000, scoped, tag = 'input window, operand 6, single buffered']
    #allocation11 [shape = 'u8[262144]{0}', space=vmem, size = 0x40000, scoped, tag = 'output window, operand 0']
    %13 = vsyncpa [#allocation3], 0
    %s14 = scalar_lea.sflag [#allocation3], 1
    %15 = vsyncpa %s14, 0
    %16 = vsyncpa [#allocation6], 0
    %s17 = scalar_lea.sflag [#allocation6], 1
    %18 = vsyncpa %s17, 0
    %19 = vsyncpa [#allocation9], 0
    %20 = vsyncpa [#allocation4], 0
    %s21 = scalar_lea.sflag [#allocation4], 1
    %22 = vsyncpa %s21, 0
    loop: start=0, step=1, limit=4
    $region2: #{gcn2_forward.1} parent=1 // loop_pre_header
      _
    $region3: #{gcn2_forward.1} parent=1 // loop_header
      %s24 = sphi 0, %s28
      %p25 = scmp.ge.s32.totalorder %s24, 4
      %s34 = sphi 0, %s36
      %s37 = sphi 0, %s34
      %s38 = sphi 0, %s37
      %s54 = sphi 0, %s38
      %s60 = sphi 0, %s62
      %s63 = sphi 0, %s60
      %s64 = sphi 0, %s63
      %s80 = sphi 0, %s64
      %s84 = sphi 0, %s84
      %s86 = sphi 0, %s84
      %s87 = sphi 0, %s86
      %s101 = sphi 0, %s87
      %s105 = sphi 0, %s105
      %s107 = sphi 0, %s105
      %s108 = sphi 0, %s107
      %s122 = sphi 0, %s108
      %s126 = sphi 0, %s126
      %s128 = sphi 0, %s126
      %s129 = sphi 0, %s128
      %s143 = sphi 0, %s129
      %s147 = sphi 0, %s147
      %s149 = sphi 0, %s147
      %s150 = sphi 0, %s149
      %s164 = sphi 0, %s150
      %s168 = sphi 0, %s168
      %s170 = sphi 0, %s168
      %s171 = sphi 0, %s170
      %s185 = sphi 0, %s171
      %s189 = sphi 0, %s189
      %s191 = sphi 0, %s189
      %s192 = sphi 0, %s191
      %s206 = sphi 0, %s192
      %s212 = sphi 0, %s214
      %s215 = sphi 0, %s212
      %s216 = sphi 0, %s215
      %s232 = sphi 0, %s216
    $region4: #{gcn2_forward.1} parent=1 // loop_header_branch
      %27 = sbr.rel (%p25) target = $region8
    $region5: #{gcn2_forward.1} parent=1 // loop_body
      %s29 = ssub.s32 %s24, 1
      %s30 = ssub.s32 %s24, 2
      %s31 = sadd.s32 %s24, 1
      %s32 = ssub.s32 %s24, %s31
      %p33 = scmp.eq.s32.totalorder %s32, 0
      %s35 = sadd.s32 %s34, 1
      %s36 = scalar_select %p33, %s34, %s35
      %p39 = pneg %p33
      %p40 = scmp.eq.s32.totalorder %s24, 1
      %p41 = por %p39, %p40
      %p42 = scmp.ne.s32.totalorder %s34, %s37
      %p43 = scmp.eq.s32.totalorder %s24, 0
      %p44 = por %p42, %p43
      %p45 = scmp.ne.s32.totalorder %s34, %s37
      %p46 = scmp.eq.s32.totalorder %s29, 1
      %p47 = por %p45, %p46
      %p48 = scmp.ne.s32.totalorder %s37, %s38
      %p49 = scmp.eq.s32.totalorder %s29, 0
      %p50 = por %p48, %p49
      %p51 = scmp.ne.s32.totalorder %s37, %s38
      %p52 = scmp.eq.s32.totalorder %s30, 1
      %p53 = por %p51, %p52
      %p55 = scmp.ne.s32.totalorder %s38, %s54
      %p56 = scmp.eq.s32.totalorder %s30, 0
      %p57 = por %p55, %p56
      %s58 = ssub.s32 %s24, %s31
      %p59 = scmp.eq.s32.totalorder %s58, 0
      %s61 = sadd.s32 %s60, 1
      %s62 = scalar_select %p59, %s60, %s61
      %p65 = pneg %p59
      %p66 = scmp.eq.s32.totalorder %s24, 1
      %p67 = por %p65, %p66
      %p68 = scmp.ne.s32.totalorder %s60, %s63
      %p69 = scmp.eq.s32.totalorder %s24, 0
      %p70 = por %p68, %p69
      %p71 = scmp.ne.s32.totalorder %s60, %s63
      %p72 = scmp.eq.s32.totalorder %s29, 1
      %p73 = por %p71, %p72
      %p74 = scmp.ne.s32.totalorder %s63, %s64
      %p75 = scmp.eq.s32.totalorder %s29, 0
      %p76 = por %p74, %p75
      %p77 = scmp.ne.s32.totalorder %s63, %s64
      %p78 = scmp.eq.s32.totalorder %s30, 1
      %p79 = por %p77, %p78
      %p81 = scmp.ne.s32.totalorder %s64, %s80
      %p82 = scmp.eq.s32.totalorder %s30, 0
      %p83 = por %p81, %p82
      %s85 = sadd.s32 %s84, 1
      %p88 = scmp.eq.s32.totalorder %s24, 1
      %p89 = scmp.ne.s32.totalorder %s84, %s86
      %p90 = scmp.eq.s32.totalorder %s24, 0
      %p91 = por %p89, %p90
      %p92 = scmp.ne.s32.totalorder %s84, %s86
      %p93 = scmp.eq.s32.totalorder %s29, 1
      %p94 = por %p92, %p93
      %p95 = scmp.ne.s32.totalorder %s86, %s87
      %p96 = scmp.eq.s32.totalorder %s29, 0
      %p97 = por %p95, %p96
      %p98 = scmp.ne.s32.totalorder %s86, %s87
      %p99 = scmp.eq.s32.totalorder %s30, 1
      %p100 = por %p98, %p99
      %p102 = scmp.ne.s32.totalorder %s87, %s101
      %p103 = scmp.eq.s32.totalorder %s30, 0
      %p104 = por %p102, %p103
      %s106 = sadd.s32 %s105, 1
      %p109 = scmp.eq.s32.totalorder %s24, 1
      %p110 = scmp.ne.s32.totalorder %s105, %s107
      %p111 = scmp.eq.s32.totalorder %s24, 0
      %p112 = por %p110, %p111
      %p113 = scmp.ne.s32.totalorder %s105, %s107
      %p114 = scmp.eq.s32.totalorder %s29, 1
      %p115 = por %p113, %p114
      %p116 = scmp.ne.s32.totalorder %s107, %s108
      %p117 = scmp.eq.s32.totalorder %s29, 0
      %p118 = por %p116, %p117
      %p119 = scmp.ne.s32.totalorder %s107, %s108
      %p120 = scmp.eq.s32.totalorder %s30, 1
      %p121 = por %p119, %p120
      %p123 = scmp.ne.s32.totalorder %s108, %s122
      %p124 = scmp.eq.s32.totalorder %s30, 0
      %p125 = por %p123, %p124
      %s127 = sadd.s32 %s126, 1
      %p130 = scmp.eq.s32.totalorder %s24, 1
      %p131 = scmp.ne.s32.totalorder %s126, %s128
      %p132 = scmp.eq.s32.totalorder %s24, 0
      %p133 = por %p131, %p132
      %p134 = scmp.ne.s32.totalorder %s126, %s128
      %p135 = scmp.eq.s32.totalorder %s29, 1
      %p136 = por %p134, %p135
      %p137 = scmp.ne.s32.totalorder %s128, %s129
      %p138 = scmp.eq.s32.totalorder %s29, 0
      %p139 = por %p137, %p138
      %p140 = scmp.ne.s32.totalorder %s128, %s129
      %p141 = scmp.eq.s32.totalorder %s30, 1
      %p142 = por %p140, %p141
      %p144 = scmp.ne.s32.totalorder %s129, %s143
      %p145 = scmp.eq.s32.totalorder %s30, 0
      %p146 = por %p144, %p145
      %s148 = sadd.s32 %s147, 1
      %p151 = scmp.eq.s32.totalorder %s24, 1
      %p152 = scmp.ne.s32.totalorder %s147, %s149
      %p153 = scmp.eq.s32.totalorder %s24, 0
      %p154 = por %p152, %p153
      %p155 = scmp.ne.s32.totalorder %s147, %s149
      %p156 = scmp.eq.s32.totalorder %s29, 1
      %p157 = por %p155, %p156
      %p158 = scmp.ne.s32.totalorder %s149, %s150
      %p159 = scmp.eq.s32.totalorder %s29, 0
      %p160 = por %p158, %p159
      %p161 = scmp.ne.s32.totalorder %s149, %s150
      %p162 = scmp.eq.s32.totalorder %s30, 1
      %p163 = por %p161, %p162
      %p165 = scmp.ne.s32.totalorder %s150, %s164
      %p166 = scmp.eq.s32.totalorder %s30, 0
      %p167 = por %p165, %p166
      %s169 = sadd.s32 %s168, 1
      %p172 = scmp.eq.s32.totalorder %s24, 1
      %p173 = scmp.ne.s32.totalorder %s168, %s170
      %p174 = scmp.eq.s32.totalorder %s24, 0
      %p175 = por %p173, %p174
      %p176 = scmp.ne.s32.totalorder %s168, %s170
      %p177 = scmp.eq.s32.totalorder %s29, 1
      %p178 = por %p176, %p177
      %p179 = scmp.ne.s32.totalorder %s170, %s171
      %p180 = scmp.eq.s32.totalorder %s29, 0
      %p181 = por %p179, %p180
      %p182 = scmp.ne.s32.totalorder %s170, %s171
      %p183 = scmp.eq.s32.totalorder %s30, 1
      %p184 = por %p182, %p183
      %p186 = scmp.ne.s32.totalorder %s171, %s185
      %p187 = scmp.eq.s32.totalorder %s30, 0
      %p188 = por %p186, %p187
      %s190 = sadd.s32 %s189, 1
      %p193 = scmp.eq.s32.totalorder %s24, 1
      %p194 = scmp.ne.s32.totalorder %s189, %s191
      %p195 = scmp.eq.s32.totalorder %s24, 0
      %p196 = por %p194, %p195
      %p197 = scmp.ne.s32.totalorder %s189, %s191
      %p198 = scmp.eq.s32.totalorder %s29, 1
      %p199 = por %p197, %p198
      %p200 = scmp.ne.s32.totalorder %s191, %s192
      %p201 = scmp.eq.s32.totalorder %s29, 0
      %p202 = por %p200, %p201
      %p203 = scmp.ne.s32.totalorder %s191, %s192
      %p204 = scmp.eq.s32.totalorder %s30, 1
      %p205 = por %p203, %p204
      %p207 = scmp.ne.s32.totalorder %s192, %s206
      %p208 = scmp.eq.s32.totalorder %s30, 0
      %p209 = por %p207, %p208
      %s210 = ssub.s32 %s24, %s31
      %p211 = scmp.eq.s32.totalorder %s210, 0
      %s213 = sadd.s32 %s212, 1
      %s214 = scalar_select %p211, %s212, %s213
      %p217 = pneg %p211
      %p218 = scmp.eq.s32.totalorder %s24, 1
      %p219 = por %p217, %p218
      %p220 = scmp.ne.s32.totalorder %s212, %s215
      %p221 = scmp.eq.s32.totalorder %s24, 0
      %p222 = por %p220, %p221
      %p223 = scmp.ne.s32.totalorder %s212, %s215
      %p224 = scmp.eq.s32.totalorder %s29, 1
      %p225 = por %p223, %p224
      %p226 = scmp.ne.s32.totalorder %s215, %s216
      %p227 = scmp.eq.s32.totalorder %s29, 0
      %p228 = por %p226, %p227
      %p229 = scmp.ne.s32.totalorder %s215, %s216
      %p230 = scmp.eq.s32.totalorder %s30, 1
      %p231 = por %p229, %p230
      %p233 = scmp.ne.s32.totalorder %s216, %s232
      %p234 = scmp.eq.s32.totalorder %s30, 0
      %p235 = por %p233, %p234
      %p236 = scmp.le.s32.totalorder 1, %s24
      %p237 = scmp.lt.s32.totalorder %s24, 3
      %p238 = pnand %p236, %p237
      %p239 = pneg %p238
      // Predicated region
      $region9: #{gcn2_forward.1} parent=5 // pred_check
        _
      $region10: #{gcn2_forward.1} parent=5 // pred_check_branch
        %241 = sbr.rel (%p238) target = $region12
      $region11: #{gcn2_forward.1} parent=5 // pred_region
        %s242 = ssub.s32 %s24, 1
        // Predicated region
        $region13: #{gcn2_forward.1} parent=11 // pred_check
          %p243 = pneg %p97
        $region14: #{gcn2_forward.1} parent=11 // pred_check_branch
          %245 = sbr.rel (%p243) target = $region16
        $region15: #{gcn2_forward.1} parent=11 // pred_region
          %s247 = ssub.s32 1024, 1024
          %248 = vsyncadd [#allocation6], %s247
          %s249 = sshll.u32 [#allocation7], 4
          %s250 = int_to_ptr.vmem [resolvable:$true] %s249
          %255 = dma.hbm_to_vmem [thread:$0]  %s2, 1024, %s250, [#allocation6], 64, 64, 4
        $region16: #{gcn2_forward.1} parent=11 // pred_fallthru
          _
        // Predicated region
        $region17: #{gcn2_forward.1} parent=11 // pred_check
          %p256 = pneg %p118
        $region18: #{gcn2_forward.1} parent=11 // pred_check_branch
          %258 = sbr.rel (%p256) target = $region20
        $region19: #{gcn2_forward.1} parent=11 // pred_region
          _
        $region20: #{gcn2_forward.1} parent=11 // pred_fallthru
          _
        // Predicated region
        $region21: #{gcn2_forward.1} parent=11 // pred_check
          %p259 = pneg %p139
        $region22: #{gcn2_forward.1} parent=11 // pred_check_branch
          %261 = sbr.rel (%p259) target = $region24
        $region23: #{gcn2_forward.1} parent=11 // pred_region
          %s263 = ssub.s32 1024, 1024
          %264 = vsyncadd [#allocation9], %s263
          %s265 = sshll.u32 [#allocation8], 4
          %s266 = int_to_ptr.vmem [resolvable:$true] %s265
          %271 = dma.hbm_to_vmem [thread:$0]  %s4, 1024, %s266, [#allocation9], 64, 64, 4
        $region24: #{gcn2_forward.1} parent=11 // pred_fallthru
          _
        // Predicated region
        $region25: #{gcn2_forward.1} parent=11 // pred_check
          %p272 = pneg %p160
        $region26: #{gcn2_forward.1} parent=11 // pred_check_branch
          %274 = sbr.rel (%p272) target = $region28
        $region27: #{gcn2_forward.1} parent=11 // pred_region
          _
        $region28: #{gcn2_forward.1} parent=11 // pred_fallthru
          _
        // Predicated region
        $region29: #{gcn2_forward.1} parent=11 // pred_check
          %p275 = pneg %p181
        $region30: #{gcn2_forward.1} parent=11 // pred_check_branch
          %277 = sbr.rel (%p275) target = $region32
        $region31: #{gcn2_forward.1} parent=11 // pred_region
          %s279 = ssub.s32 1024, 1024
          %280 = vsyncadd [#allocation9], %s279
          %s281 = sshll.u32 [#allocation10], 4
          %s282 = int_to_ptr.vmem [resolvable:$true] %s281
          %287 = dma.hbm_to_vmem [thread:$0]  %s6, 1024, %s282, [#allocation9], 64, 64, 4
        $region32: #{gcn2_forward.1} parent=11 // pred_fallthru
          _
        // Predicated region
        $region33: #{gcn2_forward.1} parent=11 // pred_check
          %p288 = pneg %p202
        $region34: #{gcn2_forward.1} parent=11 // pred_check_branch
          %290 = sbr.rel (%p288) target = $region36
        $region35: #{gcn2_forward.1} parent=11 // pred_region
          _
        $region36: #{gcn2_forward.1} parent=11 // pred_fallthru
          _
      $region12: #{gcn2_forward.1} parent=5 // pred_fallthru
        _
      %p291 = scmp.lt.s32.totalorder %s24, 2
      // Predicated region
      $region37: #{gcn2_forward.1} parent=5 // pred_check
        %p292 = pneg %p291
      $region38: #{gcn2_forward.1} parent=5 // pred_check_branch
        %294 = sbr.rel (%p292) target = $region40
      $region39: #{gcn2_forward.1} parent=5 // pred_region
        // Predicated region
        $region41: #{gcn2_forward.1} parent=39 // pred_check
          %p295 = pneg %p44
        $region42: #{gcn2_forward.1} parent=39 // pred_check_branch
          %297 = sbr.rel (%p295) target = $region44
        $region43: #{gcn2_forward.1} parent=39 // pred_region
          %s298 = sand.u32 %s34, 1
          %s299 = scalar_lea.sflag [#allocation3], %s298
          %s300 = sand.u32 %s34, 1
          %s301 = smul.addr %s300, 256
          %s302 = scalar_lea.vmem [#allocation2], %s301
          %s304 = ssub.s32 4096, 4096
          %305 = vsyncadd %s299, %s304
          %s306 = smul.addr %s24, 64
          %s307 = smul.addr %s306, 64
          %s308 = scalar_lea.hbm %s0, %s307
          %s309 = sshll.u32 %s302, 4
          %s310 = int_to_ptr.vmem [resolvable:$true] %s309
          %315 = dma.hbm_to_vmem [thread:$0]  %s308, 4096, %s310, %s299, 128, 128, 8
        $region44: #{gcn2_forward.1} parent=39 // pred_fallthru
          _
        // Predicated region
        $region45: #{gcn2_forward.1} parent=39 // pred_check
          %p316 = pneg %p70
        $region46: #{gcn2_forward.1} parent=39 // pred_check_branch
          %318 = sbr.rel (%p316) target = $region48
        $region47: #{gcn2_forward.1} parent=39 // pred_region
          %s319 = sand.u32 %s24, 1
          %s320 = scalar_lea.sflag [#allocation6], %s319
          %s321 = sand.u32 %s60, 1
          %s322 = smul.addr %s321, 128
          %s323 = scalar_lea.vmem [#allocation5], %s322
          %s325 = ssub.s32 2048, 2048
          %326 = vsyncadd %s320, %s325
          %s327 = smul.addr %s24, 32
          %s328 = smul.addr %s327, 64
          %s329 = scalar_lea.hbm %s1, %s328
          %s330 = sshll.u32 %s323, 4
          %s331 = int_to_ptr.vmem [resolvable:$true] %s330
          %336 = dma.hbm_to_vmem [thread:$0]  %s329, 2048, %s331, %s320, 64, 64, 4
        $region48: #{gcn2_forward.1} parent=39 // pred_fallthru
          _
      $region40: #{gcn2_forward.1} parent=5 // pred_fallthru
        _
      %p337 = scmp.le.s32.totalorder 1, %s24
      %p338 = scmp.lt.s32.totalorder %s24, 3
      %p339 = pnand %p337, %p338
      %p340 = pneg %p339
      // Predicated region
      $region49: #{gcn2_forward.1} parent=5 // pred_check
        _
      $region50: #{gcn2_forward.1} parent=5 // pred_check_branch
        %342 = sbr.rel (%p339) target = $region52
      $region51: #{gcn2_forward.1} parent=5 // pred_region
        %s343 = ssub.s32 %s24, 1
        %s344 = sand.u32 %s37, 1
        %s345 = scalar_lea.sflag [#allocation3], %s344
        %s346 = sand.u32 %s37, 1
        %s347 = smul.addr %s346, 256
        %s348 = scalar_lea.vmem [#allocation2], %s347
        // Predicated region
        $region53: #{gcn2_forward.1} parent=51 // pred_check
          %p349 = pneg %p50
        $region54: #{gcn2_forward.1} parent=51 // pred_check_branch
          %351 = sbr.rel (%p349) target = $region56
        $region55: #{gcn2_forward.1} parent=51 // pred_region
          %352 = dma.done %s345, 4096
        $region56: #{gcn2_forward.1} parent=51 // pred_fallthru
          _
        %s353 = sand.u32 %s29, 1
        %s354 = scalar_lea.sflag [#allocation6], %s353
        %s355 = sand.u32 %s63, 1
        %s356 = smul.addr %s355, 128
        %s357 = scalar_lea.vmem [#allocation5], %s356
        // Predicated region
        $region57: #{gcn2_forward.1} parent=51 // pred_check
          %p358 = pneg %p76
        $region58: #{gcn2_forward.1} parent=51 // pred_check_branch
          %360 = sbr.rel (%p358) target = $region60
        $region59: #{gcn2_forward.1} parent=51 // pred_region
          %361 = dma.done %s354, 2048
        $region60: #{gcn2_forward.1} parent=51 // pred_fallthru
          _
        // Predicated region
        $region61: #{gcn2_forward.1} parent=51 // pred_check
          %p362 = pneg %p97
        $region62: #{gcn2_forward.1} parent=51 // pred_check_branch
          %364 = sbr.rel (%p362) target = $region64
        $region63: #{gcn2_forward.1} parent=51 // pred_region
          %365 = dma.done [#allocation6], 1024
        $region64: #{gcn2_forward.1} parent=51 // pred_fallthru
          _
        // Predicated region
        $region65: #{gcn2_forward.1} parent=51 // pred_check
          %p366 = pneg %p139
        $region66: #{gcn2_forward.1} parent=51 // pred_check_branch
          %368 = sbr.rel (%p366) target = $region68
        $region67: #{gcn2_forward.1} parent=51 // pred_region
          %369 = dma.done [#allocation9], 1024
        $region68: #{gcn2_forward.1} parent=51 // pred_fallthru
          _
        // Predicated region
        $region69: #{gcn2_forward.1} parent=51 // pred_check
          %p370 = pneg %p181
        $region70: #{gcn2_forward.1} parent=51 // pred_check_branch
          %372 = sbr.rel (%p370) target = $region72
        $region71: #{gcn2_forward.1} parent=51 // pred_region
          %373 = dma.done [#allocation9], 1024
        $region72: #{gcn2_forward.1} parent=51 // pred_fallthru
          _
        %s374 = sand.u32 %s37, 1
        %s375 = scalar_lea.sflag [#allocation3], %s374
        %s376 = sand.u32 %s37, 1
        %s377 = smul.addr %s376, 256
        %s378 = scalar_lea.vmem [#allocation2], %s377
        %p379 = pneg %p50
        %p380 = pneg %p47
        %s381 = sand.u32 %s29, 1
        %s382 = scalar_lea.sflag [#allocation6], %s381
        %s383 = sand.u32 %s63, 1
        %s384 = smul.addr %s383, 128
        %s385 = scalar_lea.vmem [#allocation5], %s384
        %p386 = pneg %p76
        %p387 = pneg %p73
        %p388 = pneg %p97
        %p389 = pneg %p94
        %p390 = pneg %p118
        %p391 = pneg %p115
        %p392 = pneg %p139
        %p393 = pneg %p136
        %p394 = pneg %p160
        %p395 = pneg %p157
        %p396 = pneg %p181
        %p397 = pneg %p178
        %p398 = pneg %p202
        %p399 = pneg %p199
        %p400 = pneg %p228
        %p401 = pneg %p225
        %s402 = sand.u32 %s215, 1
        %s403 = scalar_lea.sflag [#allocation4], %s402
        %s404 = sand.u32 %s215, 1
        %s405 = smul.addr %s404, 256
        %s406 = scalar_lea.vmem [#allocation11], %s405
        %v408 = vld [vmem:[%s348] sm:$0xff]
        %v409 = vld [vmem:[%s348 + $0x8] sm:$0xff]
        %v410 = vld [vmem:[%s348 + $0x10] sm:$0xff]
        %v411 = vld [vmem:[%s348 + $0x18] sm:$0xff]
        %v412 = vld [vmem:[%s348 + $0x20] sm:$0xff]
        %v413 = vld [vmem:[%s348 + $0x28] sm:$0xff]
        %v414 = vld [vmem:[%s348 + $0x30] sm:$0xff]
        %v415 = vld [vmem:[%s348 + $0x38] sm:$0xff]
        %v416 = vld [vmem:[%s348 + $0x40] sm:$0xff]
        %v417 = vld [vmem:[%s348 + $0x48] sm:$0xff]
        %v418 = vld [vmem:[%s348 + $0x50] sm:$0xff]
        %v419 = vld [vmem:[%s348 + $0x58] sm:$0xff]
        %v420 = vld [vmem:[%s348 + $0x60] sm:$0xff]
        %v421 = vld [vmem:[%s348 + $0x68] sm:$0xff]
        %v422 = vld [vmem:[%s348 + $0x70] sm:$0xff]
        %v423 = vld [vmem:[%s348 + $0x78] sm:$0xff]
        %v424 = vld [vmem:[%s348 + $0x80] sm:$0xff]
        %v425 = vld [vmem:[%s348 + $0x88] sm:$0xff]
        %v426 = vld [vmem:[%s348 + $0x90] sm:$0xff]
        %v427 = vld [vmem:[%s348 + $0x98] sm:$0xff]
        %v428 = vld [vmem:[%s348 + $0xa0] sm:$0xff]
        %v429 = vld [vmem:[%s348 + $0xa8] sm:$0xff]
        %v430 = vld [vmem:[%s348 + $0xb0] sm:$0xff]
        %v431 = vld [vmem:[%s348 + $0xb8] sm:$0xff]
        %v432 = vld [vmem:[%s348 + $0xc0] sm:$0xff]
        %v433 = vld [vmem:[%s348 + $0xc8] sm:$0xff]
        %v434 = vld [vmem:[%s348 + $0xd0] sm:$0xff]
        %v435 = vld [vmem:[%s348 + $0xd8] sm:$0xff]
        %v436 = vld [vmem:[%s348 + $0xe0] sm:$0xff]
        %v437 = vld [vmem:[%s348 + $0xe8] sm:$0xff]
        %v438 = vld [vmem:[%s348 + $0xf0] sm:$0xff]
        %v439 = vld [vmem:[%s348 + $0xf8] sm:$0xff]
        %v440 = vld [vmem:[%s357] sm:$0xf]
        %v441 = vld [vmem:[%s357 + $0x4] sm:$0xf]
        %v442 = vld [vmem:[%s357 + $0x8] sm:$0xf]
        %v443 = vld [vmem:[%s357 + $0xc] sm:$0xf]
        %v444 = vld [vmem:[%s357 + $0x10] sm:$0xf]
        %v445 = vld [vmem:[%s357 + $0x14] sm:$0xf]
        %v446 = vld [vmem:[%s357 + $0x18] sm:$0xf]
        %v447 = vld [vmem:[%s357 + $0x1c] sm:$0xf]
        %v448 = vld [vmem:[%s357 + $0x20] sm:$0xf]
        %v449 = vld [vmem:[%s357 + $0x24] sm:$0xf]
        %v450 = vld [vmem:[%s357 + $0x28] sm:$0xf]
        %v451 = vld [vmem:[%s357 + $0x2c] sm:$0xf]
        %v452 = vld [vmem:[%s357 + $0x30] sm:$0xf]
        %v453 = vld [vmem:[%s357 + $0x34] sm:$0xf]
        %v454 = vld [vmem:[%s357 + $0x38] sm:$0xf]
        %v455 = vld [vmem:[%s357 + $0x3c] sm:$0xf]
        %v456 = vld [vmem:[%s357 + $0x40] sm:$0xf]
        %v457 = vld [vmem:[%s357 + $0x44] sm:$0xf]
        %v458 = vld [vmem:[%s357 + $0x48] sm:$0xf]
        %v459 = vld [vmem:[%s357 + $0x4c] sm:$0xf]
        %v460 = vld [vmem:[%s357 + $0x50] sm:$0xf]
        %v461 = vld [vmem:[%s357 + $0x54] sm:$0xf]
        %v462 = vld [vmem:[%s357 + $0x58] sm:$0xf]
        %v463 = vld [vmem:[%s357 + $0x5c] sm:$0xf]
        %v464 = vld [vmem:[%s357 + $0x60] sm:$0xf]
        %v465 = vld [vmem:[%s357 + $0x64] sm:$0xf]
        %v466 = vld [vmem:[%s357 + $0x68] sm:$0xf]
        %v467 = vld [vmem:[%s357 + $0x6c] sm:$0xf]
        %v468 = vld [vmem:[%s357 + $0x70] sm:$0xf]
        %v469 = vld [vmem:[%s357 + $0x74] sm:$0xf]
        %v470 = vld [vmem:[%s357 + $0x78] sm:$0xf]
        %v471 = vld [vmem:[%s357 + $0x7c] sm:$0xf]
        %v504 = vunpack.c.l.b16 %v408
        %v505 = vunpack.c.h.b16 %v408
        %v506 = vunpack.c.l.b16 %v409
        %v507 = vunpack.c.h.b16 %v409
        %v508 = vunpack.c.l.b16 %v410
        %v509 = vunpack.c.h.b16 %v410
        %v510 = vunpack.c.l.b16 %v411
        %v511 = vunpack.c.h.b16 %v411
        %v512 = vunpack.c.l.b16 %v412
        %v513 = vunpack.c.h.b16 %v412
        %v514 = vunpack.c.l.b16 %v413
        %v515 = vunpack.c.h.b16 %v413
        %v516 = vunpack.c.l.b16 %v414
        %v517 = vunpack.c.h.b16 %v414
        %v518 = vunpack.c.l.b16 %v415
        %v519 = vunpack.c.h.b16 %v415
        %v520 = vunpack.c.l.b16 %v416
        %v521 = vunpack.c.h.b16 %v416
        %v522 = vunpack.c.l.b16 %v417
        %v523 = vunpack.c.h.b16 %v417
        %v524 = vunpack.c.l.b16 %v418
        %v525 = vunpack.c.h.b16 %v418
        %v526 = vunpack.c.l.b16 %v419
        %v527 = vunpack.c.h.b16 %v419
        %v528 = vunpack.c.l.b16 %v420
        %v529 = vunpack.c.h.b16 %v420
        %v530 = vunpack.c.l.b16 %v421
        %v531 = vunpack.c.h.b16 %v421
        %v532 = vunpack.c.l.b16 %v422
        %v533 = vunpack.c.h.b16 %v422
        %v534 = vunpack.c.l.b16 %v423
        %v535 = vunpack.c.h.b16 %v423
        %v536 = vunpack.c.l.b16 %v424
        %v537 = vunpack.c.h.b16 %v424
        %v538 = vunpack.c.l.b16 %v425
        %v539 = vunpack.c.h.b16 %v425
        %v540 = vunpack.c.l.b16 %v426
        %v541 = vunpack.c.h.b16 %v426
        %v542 = vunpack.c.l.b16 %v427
        %v543 = vunpack.c.h.b16 %v427
        %v544 = vunpack.c.l.b16 %v428
        %v545 = vunpack.c.h.b16 %v428
        %v546 = vunpack.c.l.b16 %v429
        %v547 = vunpack.c.h.b16 %v429
        %v548 = vunpack.c.l.b16 %v430
        %v549 = vunpack.c.h.b16 %v430
        %v550 = vunpack.c.l.b16 %v431
        %v551 = vunpack.c.h.b16 %v431
        %v552 = vunpack.c.l.b16 %v432
        %v553 = vunpack.c.h.b16 %v432
        %v554 = vunpack.c.l.b16 %v433
        %v555 = vunpack.c.h.b16 %v433
        %v556 = vunpack.c.l.b16 %v434
        %v557 = vunpack.c.h.b16 %v434
        %v558 = vunpack.c.l.b16 %v435
        %v559 = vunpack.c.h.b16 %v435
        %v560 = vunpack.c.l.b16 %v436
        %v561 = vunpack.c.h.b16 %v436
        %v562 = vunpack.c.l.b16 %v437
        %v563 = vunpack.c.h.b16 %v437
        %v564 = vunpack.c.l.b16 %v438
        %v565 = vunpack.c.h.b16 %v438
        %v566 = vunpack.c.l.b16 %v439
        %v567 = vunpack.c.h.b16 %v439
        %v568 = vpack.c.b16 %v506, %v504
        %v569 = vpack.c.b16 %v507, %v505
        %v570 = vpack.c.b16 %v510, %v508
        %v571 = vpack.c.b16 %v511, %v509
        %v572 = vpack.c.b16 %v514, %v512
        %v573 = vpack.c.b16 %v515, %v513
        %v574 = vpack.c.b16 %v518, %v516
        %v575 = vpack.c.b16 %v519, %v517
        %v576 = vpack.c.b16 %v522, %v520
        %v577 = vpack.c.b16 %v523, %v521
        %v578 = vpack.c.b16 %v526, %v524
        %v579 = vpack.c.b16 %v527, %v525
        %v580 = vpack.c.b16 %v530, %v528
        %v581 = vpack.c.b16 %v531, %v529
        %v582 = vpack.c.b16 %v534, %v532
        %v583 = vpack.c.b16 %v535, %v533
        %v584 = vpack.c.b16 %v538, %v536
        %v585 = vpack.c.b16 %v539, %v537
        %v586 = vpack.c.b16 %v542, %v540
        %v587 = vpack.c.b16 %v543, %v541
        %v588 = vpack.c.b16 %v546, %v544
        %v589 = vpack.c.b16 %v547, %v545
        %v590 = vpack.c.b16 %v550, %v548
        %v591 = vpack.c.b16 %v551, %v549
        %v592 = vpack.c.b16 %v554, %v552
        %v593 = vpack.c.b16 %v555, %v553
        %v594 = vpack.c.b16 %v558, %v556
        %v595 = vpack.c.b16 %v559, %v557
        %v596 = vpack.c.b16 %v562, %v560
        %v597 = vpack.c.b16 %v563, %v561
        %v598 = vpack.c.b16 %v566, %v564
        %v599 = vpack.c.b16 %v567, %v565
        %v664 = vunpack.c.l.b16 %v440
        %v665 = vunpack.c.l.b16 %v441
        %v666 = vunpack.c.l.b16 %v442
        %v667 = vunpack.c.l.b16 %v443
        %v668 = vunpack.c.l.b16 %v444
        %v669 = vunpack.c.l.b16 %v445
        %v670 = vunpack.c.l.b16 %v446
        %v671 = vunpack.c.l.b16 %v447
        %v672 = vunpack.c.l.b16 %v448
        %v673 = vunpack.c.l.b16 %v449
        %v674 = vunpack.c.l.b16 %v450
        %v675 = vunpack.c.l.b16 %v451
        %v676 = vunpack.c.l.b16 %v452
        %v677 = vunpack.c.l.b16 %v453
        %v678 = vunpack.c.l.b16 %v454
        %v679 = vunpack.c.l.b16 %v455
        %v680 = vunpack.c.l.b16 %v456
        %v681 = vunpack.c.l.b16 %v457
        %v682 = vunpack.c.l.b16 %v458
        %v683 = vunpack.c.l.b16 %v459
        %v684 = vunpack.c.l.b16 %v460
        %v685 = vunpack.c.l.b16 %v461
        %v686 = vunpack.c.l.b16 %v462
        %v687 = vunpack.c.l.b16 %v463
        %v688 = vunpack.c.l.b16 %v464
        %v689 = vunpack.c.l.b16 %v465
        %v690 = vunpack.c.l.b16 %v466
        %v691 = vunpack.c.l.b16 %v467
        %v692 = vunpack.c.l.b16 %v468
        %v693 = vunpack.c.l.b16 %v469
        %v694 = vunpack.c.l.b16 %v470
        %v695 = vunpack.c.l.b16 %v471
        %v696 = vpack.c.b16 %v665, %v664
        %v697 = vpack.c.b16 %v667, %v666
        %v698 = vpack.c.b16 %v669, %v668
        %v699 = vpack.c.b16 %v671, %v670
        %v700 = vpack.c.b16 %v673, %v672
        %v701 = vpack.c.b16 %v675, %v674
        %v702 = vpack.c.b16 %v677, %v676
        %v703 = vpack.c.b16 %v679, %v678
        %v704 = vpack.c.b16 %v681, %v680
        %v705 = vpack.c.b16 %v683, %v682
        %v706 = vpack.c.b16 %v685, %v684
        %v707 = vpack.c.b16 %v687, %v686
        %v708 = vpack.c.b16 %v689, %v688
        %v709 = vpack.c.b16 %v691, %v690
        %v710 = vpack.c.b16 %v693, %v692
        %v711 = vpack.c.b16 %v695, %v694
        %728 = vmatprep.subr.bf16.mxu0 0
        %729 = vmatpush1.bf16.msra.mxu0 %v696
        %730 = vmatprep.subr.bf16.mxu0 0
        %731 = vmatpush1.bf16.msra.mxu0 %v697
        %732 = vmatprep.subr.bf16.mxu0 0
        %733 = vmatpush1.bf16.msra.mxu0 %v698
        %734 = vmatprep.subr.bf16.mxu0 0
        %735 = vmatpush1.bf16.msra.mxu0 %v699
        %736 = vmatprep.subr.bf16.mxu0 0
        %737 = vmatpush1.bf16.msra.mxu0 %v700
        %738 = vmatprep.subr.bf16.mxu0 0
        %739 = vmatpush1.bf16.msra.mxu0 %v701
        %740 = vmatprep.subr.bf16.mxu0 0
        %741 = vmatpush1.bf16.msra.mxu0 %v702
        %742 = vmatprep.subr.bf16.mxu0 0
        %743 = vmatpush1.bf16.msra.mxu0 %v703
        %744 = vmatprep.subr.bf16.mxu0 0
        %745 = vmatpush1.bf16.msra.mxu0 %v704
        %746 = vmatprep.subr.bf16.mxu0 0
        %747 = vmatpush1.bf16.msra.mxu0 %v705
        %748 = vmatprep.subr.bf16.mxu0 0
        %749 = vmatpush1.bf16.msra.mxu0 %v706
        %750 = vmatprep.subr.bf16.mxu0 0
        %751 = vmatpush1.bf16.msra.mxu0 %v707
        %752 = vmatprep.subr.bf16.mxu0 0
        %753 = vmatpush1.bf16.msra.mxu0 %v708
        %754 = vmatprep.subr.bf16.mxu0 0
        %755 = vmatpush1.bf16.msra.mxu0 %v709
        %756 = vmatprep.subr.bf16.mxu0 0
        %757 = vmatpush1.bf16.msra.mxu0 %v710
        %758 = vmatprep.subr.bf16.mxu0 0
        %759 = vmatpush1.bf16.msra.mxu0 %v711
        %760 = vmatprep.mubr.bf16.mxu0 %v569
        %761 = vmatmul.mubr.bf16.gmra.mrb[0].mxu0 %v568
        %v762 = vpop.f32.mrb[0].mxu0
        %v763 = vadd.f32 0.0, %v762
        %v764 = vpop.f32.mrb[0].mxu0
        %v765 = vpop.f32.mrb[0].mxu0
        %v766 = vadd.f32 0.0, %v765
        %v767 = vpop.f32.mrb[0].mxu0
        %768 = vmatprep.mubr.bf16.mxu0 %v571
        %769 = vmatmul.mubr.bf16.gmra.mrb[0].mxu0 %v570
        %v770 = vpop.f32.mrb[0].mxu0
        %v771 = vadd.f32 0.0, %v770
        %v772 = vpop.f32.mrb[0].mxu0
        %v773 = vpop.f32.mrb[0].mxu0
        %v774 = vadd.f32 0.0, %v773
        %v775 = vpop.f32.mrb[0].mxu0
        %776 = vmatprep.mubr.bf16.mxu0 %v573
        %777 = vmatmul.mubr.bf16.gmra.mrb[0].mxu0 %v572
        %v778 = vpop.f32.mrb[0].mxu0
        %v779 = vadd.f32 0.0, %v778
        %v780 = vpop.f32.mrb[0].mxu0
        %v781 = vpop.f32.mrb[0].mxu0
        %v782 = vadd.f32 0.0, %v781
        %v783 = vpop.f32.mrb[0].mxu0
        %784 = vmatprep.mubr.bf16.mxu0 %v575
        %785 = vmatmul.mubr.bf16.gmra.mrb[0].mxu0 %v574
        %v786 = vpop.f32.mrb[0].mxu0
        %v787 = vadd.f32 0.0, %v786
        %v788 = vpop.f32.mrb[0].mxu0
        %v789 = vpop.f32.mrb[0].mxu0
        %v790 = vadd.f32 0.0, %v789
        %v791 = vpop.f32.mrb[0].mxu0
        %792 = vmatprep.mubr.bf16.mxu0 %v577
        %793 = vmatmul.mubr.bf16.gmra.mrb[0].mxu0 %v576
        %v794 = vpop.f32.mrb[0].mxu0
        %v795 = vadd.f32 0.0, %v794
        %v796 = vpop.f32.mrb[0].mxu0
        %v797 = vpop.f32.mrb[0].mxu0
        %v798 = vadd.f32 0.0, %v797
        %v799 = vpop.f32.mrb[0].mxu0
        %800 = vmatprep.mubr.bf16.mxu0 %v579
        %801 = vmatmul.mubr.bf16.gmra.mrb[0].mxu0 %v578
        %v802 = vpop.f32.mrb[0].mxu0
        %v803 = vadd.f32 0.0, %v802
        %v804 = vpop.f32.mrb[0].mxu0
        %v805 = vpop.f32.mrb[0].mxu0
        %v806 = vadd.f32 0.0, %v805
        %v807 = vpop.f32.mrb[0].mxu0
        %808 = vmatprep.mubr.bf16.mxu0 %v581
        %809 = vmatmul.mubr.bf16.gmra.mrb[0].mxu0 %v580
        %v810 = vpop.f32.mrb[0].mxu0
        %v811 = vadd.f32 0.0, %v810
        %v812 = vpop.f32.mrb[0].mxu0
        %v813 = vpop.f32.mrb[0].mxu0
        %v814 = vadd.f32 0.0, %v813
        %v815 = vpop.f32.mrb[0].mxu0
        %816 = vmatprep.mubr.bf16.mxu0 %v583
        %817 = vmatmul.mubr.bf16.gmra.mrb[0].mxu0 %v582
        %v818 = vpop.f32.mrb[0].mxu0
        %v819 = vadd.f32 0.0, %v818
        %v820 = vpop.f32.mrb[0].mxu0
        %v821 = vpop.f32.mrb[0].mxu0
        %v822 = vadd.f32 0.0, %v821
        %v823 = vpop.f32.mrb[0].mxu0
        %824 = vmatprep.mubr.bf16.mxu0 %v585
        %825 = vmatmul.mubr.bf16.gmra.mrb[0].mxu0 %v584
        %v826 = vpop.f32.mrb[0].mxu0
        %v827 = vadd.f32 0.0, %v826
        %v828 = vpop.f32.mrb[0].mxu0
        %v829 = vpop.f32.mrb[0].mxu0
        %v830 = vadd.f32 0.0, %v829
        %v831 = vpop.f32.mrb[0].mxu0
        %832 = vmatprep.mubr.bf16.mxu0 %v587
        %833 = vmatmul.mubr.bf16.gmra.mrb[0].mxu0 %v586
        %v834 = vpop.f32.mrb[0].mxu0
        %v835 = vadd.f32 0.0, %v834
        %v836 = vpop.f32.mrb[0].mxu0
        %v837 = vpop.f32.mrb[0].mxu0
        %v838 = vadd.f32 0.0, %v837
        %v839 = vpop.f32.mrb[0].mxu0
        %840 = vmatprep.mubr.bf16.mxu0 %v589
        %841 = vmatmul.mubr.bf16.gmra.mrb[0].mxu0 %v588
        %v842 = vpop.f32.mrb[0].mxu0
        %v843 = vadd.f32 0.0, %v842
        %v844 = vpop.f32.mrb[0].mxu0
        %v845 = vpop.f32.mrb[0].mxu0
        %v846 = vadd.f32 0.0, %v845
        %v847 = vpop.f32.mrb[0].mxu0
        %848 = vmatprep.mubr.bf16.mxu0 %v591
        %849 = vmatmul.mubr.bf16.gmra.mrb[0].mxu0 %v590
        %v850 = vpop.f32.mrb[0].mxu0
        %v851 = vadd.f32 0.0, %v850
        %v852 = vpop.f32.mrb[0].mxu0
        %v853 = vpop.f32.mrb[0].mxu0
        %v854 = vadd.f32 0.0, %v853
        %v855 = vpop.f32.mrb[0].mxu0
        %856 = vmatprep.mubr.bf16.mxu0 %v593
        %857 = vmatmul.mubr.bf16.gmra.mrb[0].mxu0 %v592
        %v858 = vpop.f32.mrb[0].mxu0
        %v859 = vadd.f32 0.0, %v858
        %v860 = vpop.f32.mrb[0].mxu0
        %v861 = vpop.f32.mrb[0].mxu0
        %v862 = vadd.f32 0.0, %v861
        %v863 = vpop.f32.mrb[0].mxu0
        %864 = vmatprep.mubr.bf16.mxu0 %v595
        %865 = vmatmul.mubr.bf16.gmra.mrb[0].mxu0 %v594
        %v866 = vpop.f32.mrb[0].mxu0
        %v867 = vadd.f32 0.0, %v866
        %v868 = vpop.f32.mrb[0].mxu0
        %v869 = vpop.f32.mrb[0].mxu0
        %v870 = vadd.f32 0.0, %v869
        %v871 = vpop.f32.mrb[0].mxu0
        %872 = vmatprep.mubr.bf16.mxu0 %v597
        %873 = vmatmul.mubr.bf16.gmra.mrb[0].mxu0 %v596
        %v874 = vpop.f32.mrb[0].mxu0
        %v875 = vadd.f32 0.0, %v874
        %v876 = vpop.f32.mrb[0].mxu0
        %v877 = vpop.f32.mrb[0].mxu0
        %v878 = vadd.f32 0.0, %v877
        %v879 = vpop.f32.mrb[0].mxu0
        %880 = vmatprep.mubr.bf16.mxu0 %v599
        %881 = vmatmul.mubr.bf16.gmra.mrb[0].mxu0 %v598
        %v882 = vpop.f32.mrb[0].mxu0
        %v883 = vadd.f32 0.0, %v882
        %v884 = vpop.f32.mrb[0].mxu0
        %v885 = vpop.f32.mrb[0].mxu0
        %v886 = vadd.f32 0.0, %v885
        %v887 = vpop.f32.mrb[0].mxu0
        %888 = vdwg.mxu0
        %v889 = vpack.c.bf16 %v766, %v763
        %v890 = vpack.c.bf16 %v774, %v771
        %v891 = vpack.c.bf16 %v782, %v779
        %v892 = vpack.c.bf16 %v790, %v787
        %v893 = vpack.c.bf16 %v798, %v795
        %v894 = vpack.c.bf16 %v806, %v803
        %v895 = vpack.c.bf16 %v814, %v811
        %v896 = vpack.c.bf16 %v822, %v819
        %v897 = vpack.c.bf16 %v830, %v827
        %v898 = vpack.c.bf16 %v838, %v835
        %v899 = vpack.c.bf16 %v846, %v843
        %v900 = vpack.c.bf16 %v854, %v851
        %v901 = vpack.c.bf16 %v862, %v859
        %v902 = vpack.c.bf16 %v870, %v867
        %v903 = vpack.c.bf16 %v878, %v875
        %v904 = vpack.c.bf16 %v886, %v883
        %v905 = vld [vmem:[#allocation7] sm:$0xf]
        %v906 = vld [vmem:[#allocation7 + $0x4] sm:$0xf]
        %v907 = vld [vmem:[#allocation7 + $0x8] sm:$0xf]
        %v908 = vld [vmem:[#allocation7 + $0xc] sm:$0xf]
        %v909 = vld [vmem:[#allocation7 + $0x10] sm:$0xf]
        %v910 = vld [vmem:[#allocation7 + $0x14] sm:$0xf]
        %v911 = vld [vmem:[#allocation7 + $0x18] sm:$0xf]
        %v912 = vld [vmem:[#allocation7 + $0x1c] sm:$0xf]
        %v913 = vld [vmem:[#allocation7 + $0x20] sm:$0xf]
        %v914 = vld [vmem:[#allocation7 + $0x24] sm:$0xf]
        %v915 = vld [vmem:[#allocation7 + $0x28] sm:$0xf]
        %v916 = vld [vmem:[#allocation7 + $0x2c] sm:$0xf]
        %v917 = vld [vmem:[#allocation7 + $0x30] sm:$0xf]
        %v918 = vld [vmem:[#allocation7 + $0x34] sm:$0xf]
        %v919 = vld [vmem:[#allocation7 + $0x38] sm:$0xf]
        %v920 = vld [vmem:[#allocation7 + $0x3c] sm:$0xf]
        %v921 = vld [vmem:[%s3] sm:$0x1]
        %v923 = vlaneseq
        %v924 = vshrl.u32 %v923, 7
        %v925 = vsub.s32 0, %v924
        %v926 = vrot.slane %v921, %v925
        %v944 = vunpack.c.l.b16 %v905
        %v945 = vunpack.c.l.b16 %v906
        %v946 = vunpack.c.l.b16 %v907
        %v947 = vunpack.c.l.b16 %v908
        %v948 = vunpack.c.l.b16 %v909
        %v949 = vunpack.c.l.b16 %v910
        %v950 = vunpack.c.l.b16 %v911
        %v951 = vunpack.c.l.b16 %v912
        %v952 = vunpack.c.l.b16 %v913
        %v953 = vunpack.c.l.b16 %v914
        %v954 = vunpack.c.l.b16 %v915
        %v955 = vunpack.c.l.b16 %v916
        %v956 = vunpack.c.l.b16 %v917
        %v957 = vunpack.c.l.b16 %v918
        %v958 = vunpack.c.l.b16 %v919
        %v959 = vunpack.c.l.b16 %v920
        %v960 = vpack.c.b16 %v945, %v944
        %v961 = vpack.c.b16 %v947, %v946
        %v962 = vpack.c.b16 %v949, %v948
        %v963 = vpack.c.b16 %v951, %v950
        %v964 = vpack.c.b16 %v953, %v952
        %v965 = vpack.c.b16 %v955, %v954
        %v966 = vpack.c.b16 %v957, %v956
        %v967 = vpack.c.b16 %v959, %v958
        %976 = vmatprep.subr.bf16.mxu0 0
        %977 = vmatpush1.bf16.msra.mxu0 %v960
        %978 = vmatprep.subr.bf16.mxu0 0
        %979 = vmatpush1.bf16.msra.mxu0 %v961
        %980 = vmatprep.subr.bf16.mxu0 0
        %981 = vmatpush1.bf16.msra.mxu0 %v962
        %982 = vmatprep.subr.bf16.mxu0 0
        %983 = vmatpush1.bf16.msra.mxu0 %v963
        %984 = vmatprep.subr.bf16.mxu0 0
        %985 = vmatpush1.bf16.msra.mxu0 %v964
        %986 = vmatprep.subr.bf16.mxu0 0
        %987 = vmatpush1.bf16.msra.mxu0 %v965
        %988 = vmatprep.subr.bf16.mxu0 0
        %989 = vmatpush1.bf16.msra.mxu0 %v966
        %990 = vmatprep.subr.bf16.mxu0 0
        %991 = vmatpush1.bf16.msra.mxu0 %v967
        %992 = vmatprep.subr.bf16.mxu0 0
        %993 = vmatpush1.bf16.msra.mxu0 0
        %994 = vmatprep.subr.bf16.mxu0 0
        %995 = vmatpush1.bf16.msra.mxu0 0
        %996 = vmatprep.subr.bf16.mxu0 0
        %997 = vmatpush1.bf16.msra.mxu0 0
        %998 = vmatprep.subr.bf16.mxu0 0
        %999 = vmatpush1.bf16.msra.mxu0 0
        %1000 = vmatprep.subr.bf16.mxu0 0
        %1001 = vmatpush1.bf16.msra.mxu0 0
        %1002 = vmatprep.subr.bf16.mxu0 0
        %1003 = vmatpush1.bf16.msra.mxu0 0
        %1004 = vmatprep.subr.bf16.mxu0 0
        %1005 = vmatpush1.bf16.msra.mxu0 0
        %1006 = vmatprep.subr.bf16.mxu0 0
        %1007 = vmatpush1.bf16.msra.mxu0 0
        %1008 = vmatprep.mubr.bf16.mxu0 0
        %1009 = vmatmul.mubr.bf16.gmra.mrb[0].mxu0 %v889
        %v1010 = vpop.f32.mrb[0].mxu0
        %v1011 = vadd.f32 %v926, %v1010
        %v1012 = vpop.f32.mrb[0].mxu0
        %v1013 = vpop.f32.mrb[0].mxu0
        %v1014 = vadd.f32 %v926, %v1013
        %v1015 = vpop.f32.mrb[0].mxu0
        %1016 = vmatprep.mubr.bf16.mxu0 0
        %1017 = vmatmul.mubr.bf16.gmra.mrb[0].mxu0 %v890
        %v1018 = vpop.f32.mrb[0].mxu0
        %v1019 = vadd.f32 %v926, %v1018
        %v1020 = vpop.f32.mrb[0].mxu0
        %v1021 = vpop.f32.mrb[0].mxu0
        %v1022 = vadd.f32 %v926, %v1021
        %v1023 = vpop.f32.mrb[0].mxu0
        %1024 = vmatprep.mubr.bf16.mxu0 0
        %1025 = vmatmul.mubr.bf16.gmra.mrb[0].mxu0 %v891
        %v1026 = vpop.f32.mrb[0].mxu0
        %v1027 = vadd.f32 %v926, %v1026
        %v1028 = vpop.f32.mrb[0].mxu0
        %v1029 = vpop.f32.mrb[0].mxu0
        %v1030 = vadd.f32 %v926, %v1029
        %v1031 = vpop.f32.mrb[0].mxu0
        %1032 = vmatprep.mubr.bf16.mxu0 0
        %1033 = vmatmul.mubr.bf16.gmra.mrb[0].mxu0 %v892
        %v1034 = vpop.f32.mrb[0].mxu0
        %v1035 = vadd.f32 %v926, %v1034
        %v1036 = vpop.f32.mrb[0].mxu0
        %v1037 = vpop.f32.mrb[0].mxu0
        %v1038 = vadd.f32 %v926, %v1037
        %v1039 = vpop.f32.mrb[0].mxu0
        %1040 = vmatprep.mubr.bf16.mxu0 0
        %1041 = vmatmul.mubr.bf16.gmra.mrb[0].mxu0 %v893
        %v1042 = vpop.f32.mrb[0].mxu0
        %v1043 = vadd.f32 %v926, %v1042
        %v1044 = vpop.f32.mrb[0].mxu0
        %v1045 = vpop.f32.mrb[0].mxu0
        %v1046 = vadd.f32 %v926, %v1045
        %v1047 = vpop.f32.mrb[0].mxu0
        %1048 = vmatprep.mubr.bf16.mxu0 0
        %1049 = vmatmul.mubr.bf16.gmra.mrb[0].mxu0 %v894
        %v1050 = vpop.f32.mrb[0].mxu0
        %v1051 = vadd.f32 %v926, %v1050
        %v1052 = vpop.f32.mrb[0].mxu0
        %v1053 = vpop.f32.mrb[0].mxu0
        %v1054 = vadd.f32 %v926, %v1053
        %v1055 = vpop.f32.mrb[0].mxu0
        %1056 = vmatprep.mubr.bf16.mxu0 0
        %1057 = vmatmul.mubr.bf16.gmra.mrb[0].mxu0 %v895
        %v1058 = vpop.f32.mrb[0].mxu0
        %v1059 = vadd.f32 %v926, %v1058
        %v1060 = vpop.f32.mrb[0].mxu0
        %v1061 = vpop.f32.mrb[0].mxu0
        %v1062 = vadd.f32 %v926, %v1061
        %v1063 = vpop.f32.mrb[0].mxu0
        %1064 = vmatprep.mubr.bf16.mxu0 0
        %1065 = vmatmul.mubr.bf16.gmra.mrb[0].mxu0 %v896
        %v1066 = vpop.f32.mrb[0].mxu0
        %v1067 = vadd.f32 %v926, %v1066
        %v1068 = vpop.f32.mrb[0].mxu0
        %v1069 = vpop.f32.mrb[0].mxu0
        %v1070 = vadd.f32 %v926, %v1069
        %v1071 = vpop.f32.mrb[0].mxu0
        %1072 = vmatprep.mubr.bf16.mxu0 0
        %1073 = vmatmul.mubr.bf16.gmra.mrb[0].mxu0 %v897
        %v1074 = vpop.f32.mrb[0].mxu0
        %v1075 = vadd.f32 %v926, %v1074
        %v1076 = vpop.f32.mrb[0].mxu0
        %v1077 = vpop.f32.mrb[0].mxu0
        %v1078 = vadd.f32 %v926, %v1077
        %v1079 = vpop.f32.mrb[0].mxu0
        %1080 = vmatprep.mubr.bf16.mxu0 0
        %1081 = vmatmul.mubr.bf16.gmra.mrb[0].mxu0 %v898
        %v1082 = vpop.f32.mrb[0].mxu0
        %v1083 = vadd.f32 %v926, %v1082
        %v1084 = vpop.f32.mrb[0].mxu0
        %v1085 = vpop.f32.mrb[0].mxu0
        %v1086 = vadd.f32 %v926, %v1085
        %v1087 = vpop.f32.mrb[0].mxu0
        %1088 = vmatprep.mubr.bf16.mxu0 0
        %1089 = vmatmul.mubr.bf16.gmra.mrb[0].mxu0 %v899
        %v1090 = vpop.f32.mrb[0].mxu0
        %v1091 = vadd.f32 %v926, %v1090
        %v1092 = vpop.f32.mrb[0].mxu0
        %v1093 = vpop.f32.mrb[0].mxu0
        %v1094 = vadd.f32 %v926, %v1093
        %v1095 = vpop.f32.mrb[0].mxu0
        %1096 = vmatprep.mubr.bf16.mxu0 0
        %1097 = vmatmul.mubr.bf16.gmra.mrb[0].mxu0 %v900
        %v1098 = vpop.f32.mrb[0].mxu0
        %v1099 = vadd.f32 %v926, %v1098
        %v1100 = vpop.f32.mrb[0].mxu0
        %v1101 = vpop.f32.mrb[0].mxu0
        %v1102 = vadd.f32 %v926, %v1101
        %v1103 = vpop.f32.mrb[0].mxu0
        %1104 = vmatprep.mubr.bf16.mxu0 0
        %1105 = vmatmul.mubr.bf16.gmra.mrb[0].mxu0 %v901
        %v1106 = vpop.f32.mrb[0].mxu0
        %v1107 = vadd.f32 %v926, %v1106
        %v1108 = vpop.f32.mrb[0].mxu0
        %v1109 = vpop.f32.mrb[0].mxu0
        %v1110 = vadd.f32 %v926, %v1109
        %v1111 = vpop.f32.mrb[0].mxu0
        %1112 = vmatprep.mubr.bf16.mxu0 0
        %1113 = vmatmul.mubr.bf16.gmra.mrb[0].mxu0 %v902
        %v1114 = vpop.f32.mrb[0].mxu0
        %v1115 = vadd.f32 %v926, %v1114
        %v1116 = vpop.f32.mrb[0].mxu0
        %v1117 = vpop.f32.mrb[0].mxu0
        %v1118 = vadd.f32 %v926, %v1117
        %v1119 = vpop.f32.mrb[0].mxu0
        %1120 = vmatprep.mubr.bf16.mxu0 0
        %1121 = vmatmul.mubr.bf16.gmra.mrb[0].mxu0 %v903
        %v1122 = vpop.f32.mrb[0].mxu0
        %v1123 = vadd.f32 %v926, %v1122
        %v1124 = vpop.f32.mrb[0].mxu0
        %v1125 = vpop.f32.mrb[0].mxu0
        %v1126 = vadd.f32 %v926, %v1125
        %v1127 = vpop.f32.mrb[0].mxu0
        %1128 = vmatprep.mubr.bf16.mxu0 0
        %1129 = vmatmul.mubr.bf16.gmra.mrb[0].mxu0 %v904
        %v1130 = vpop.f32.mrb[0].mxu0
        %v1131 = vadd.f32 %v926, %v1130
        %v1132 = vpop.f32.mrb[0].mxu0
        %v1133 = vpop.f32.mrb[0].mxu0
        %v1134 = vadd.f32 %v926, %v1133
        %v1135 = vpop.f32.mrb[0].mxu0
        %1136 = vdwg.mxu0
        %vm1137 = vcmp.gt.f32.partialorder %v1011, 0.0
        %vm1138 = vcmp.gt.f32.partialorder %v1014, 0.0
        %vm1139 = vcmp.gt.f32.partialorder %v1019, 0.0
        %vm1140 = vcmp.gt.f32.partialorder %v1022, 0.0
        %vm1141 = vcmp.gt.f32.partialorder %v1027, 0.0
        %vm1142 = vcmp.gt.f32.partialorder %v1030, 0.0
        %vm1143 = vcmp.gt.f32.partialorder %v1035, 0.0
        %vm1144 = vcmp.gt.f32.partialorder %v1038, 0.0
        %vm1145 = vcmp.gt.f32.partialorder %v1043, 0.0
        %vm1146 = vcmp.gt.f32.partialorder %v1046, 0.0
        %vm1147 = vcmp.gt.f32.partialorder %v1051, 0.0
        %vm1148 = vcmp.gt.f32.partialorder %v1054, 0.0
        %vm1149 = vcmp.gt.f32.partialorder %v1059, 0.0
        %vm1150 = vcmp.gt.f32.partialorder %v1062, 0.0
        %vm1151 = vcmp.gt.f32.partialorder %v1067, 0.0
        %vm1152 = vcmp.gt.f32.partialorder %v1070, 0.0
        %vm1153 = vcmp.gt.f32.partialorder %v1075, 0.0
        %vm1154 = vcmp.gt.f32.partialorder %v1078, 0.0
        %vm1155 = vcmp.gt.f32.partialorder %v1083, 0.0
        %vm1156 = vcmp.gt.f32.partialorder %v1086, 0.0
        %vm1157 = vcmp.gt.f32.partialorder %v1091, 0.0
        %vm1158 = vcmp.gt.f32.partialorder %v1094, 0.0
        %vm1159 = vcmp.gt.f32.partialorder %v1099, 0.0
        %vm1160 = vcmp.gt.f32.partialorder %v1102, 0.0
        %vm1161 = vcmp.gt.f32.partialorder %v1107, 0.0
        %vm1162 = vcmp.gt.f32.partialorder %v1110, 0.0
        %vm1163 = vcmp.gt.f32.partialorder %v1115, 0.0
        %vm1164 = vcmp.gt.f32.partialorder %v1118, 0.0
        %vm1165 = vcmp.gt.f32.partialorder %v1123, 0.0
        %vm1166 = vcmp.gt.f32.partialorder %v1126, 0.0
        %vm1167 = vcmp.gt.f32.partialorder %v1131, 0.0
        %vm1168 = vcmp.gt.f32.partialorder %v1134, 0.0
        %v1169 = vmul.f32 %v1011, 0.01
        %v1170 = vmul.f32 %v1014, 0.01
        %v1171 = vmul.f32 %v1019, 0.01
        %v1172 = vmul.f32 %v1022, 0.01
        %v1173 = vmul.f32 %v1027, 0.01
        %v1174 = vmul.f32 %v1030, 0.01
        %v1175 = vmul.f32 %v1035, 0.01
        %v1176 = vmul.f32 %v1038, 0.01
        %v1177 = vmul.f32 %v1043, 0.01
        %v1178 = vmul.f32 %v1046, 0.01
        %v1179 = vmul.f32 %v1051, 0.01
        %v1180 = vmul.f32 %v1054, 0.01
        %v1181 = vmul.f32 %v1059, 0.01
        %v1182 = vmul.f32 %v1062, 0.01
        %v1183 = vmul.f32 %v1067, 0.01
        %v1184 = vmul.f32 %v1070, 0.01
        %v1185 = vmul.f32 %v1075, 0.01
        %v1186 = vmul.f32 %v1078, 0.01
        %v1187 = vmul.f32 %v1083, 0.01
        %v1188 = vmul.f32 %v1086, 0.01
        %v1189 = vmul.f32 %v1091, 0.01
        %v1190 = vmul.f32 %v1094, 0.01
        %v1191 = vmul.f32 %v1099, 0.01
        %v1192 = vmul.f32 %v1102, 0.01
        %v1193 = vmul.f32 %v1107, 0.01
        %v1194 = vmul.f32 %v1110, 0.01
        %v1195 = vmul.f32 %v1115, 0.01
        %v1196 = vmul.f32 %v1118, 0.01
        %v1197 = vmul.f32 %v1123, 0.01
        %v1198 = vmul.f32 %v1126, 0.01
        %v1199 = vmul.f32 %v1131, 0.01
        %v1200 = vmul.f32 %v1134, 0.01
        %v1201 = vsel %vm1137, %v1011, %v1169
        %v1202 = vsel %vm1138, %v1014, %v1170
        %v1203 = vsel %vm1139, %v1019, %v1171
        %v1204 = vsel %vm1140, %v1022, %v1172
        %v1205 = vsel %vm1141, %v1027, %v1173
        %v1206 = vsel %vm1142, %v1030, %v1174
        %v1207 = vsel %vm1143, %v1035, %v1175
        %v1208 = vsel %vm1144, %v1038, %v1176
        %v1209 = vsel %vm1145, %v1043, %v1177
        %v1210 = vsel %vm1146, %v1046, %v1178
        %v1211 = vsel %vm1147, %v1051, %v1179
        %v1212 = vsel %vm1148, %v1054, %v1180
        %v1213 = vsel %vm1149, %v1059, %v1181
        %v1214 = vsel %vm1150, %v1062, %v1182
        %v1215 = vsel %vm1151, %v1067, %v1183
        %v1216 = vsel %vm1152, %v1070, %v1184
        %v1217 = vsel %vm1153, %v1075, %v1185
        %v1218 = vsel %vm1154, %v1078, %v1186
        %v1219 = vsel %vm1155, %v1083, %v1187
        %v1220 = vsel %vm1156, %v1086, %v1188
        %v1221 = vsel %vm1157, %v1091, %v1189
        %v1222 = vsel %vm1158, %v1094, %v1190
        %v1223 = vsel %vm1159, %v1099, %v1191
        %v1224 = vsel %vm1160, %v1102, %v1192
        %v1225 = vsel %vm1161, %v1107, %v1193
        %v1226 = vsel %vm1162, %v1110, %v1194
        %v1227 = vsel %vm1163, %v1115, %v1195
        %v1228 = vsel %vm1164, %v1118, %v1196
        %v1229 = vsel %vm1165, %v1123, %v1197
        %v1230 = vsel %vm1166, %v1126, %v1198
        %v1231 = vsel %vm1167, %v1131, %v1199
        %v1232 = vsel %vm1168, %v1134, %v1200
        %v1233 = vpack.c.bf16 %v1202, %v1201
        %v1234 = vpack.c.bf16 %v1204, %v1203
        %v1235 = vpack.c.bf16 %v1206, %v1205
        %v1236 = vpack.c.bf16 %v1208, %v1207
        %v1237 = vpack.c.bf16 %v1210, %v1209
        %v1238 = vpack.c.bf16 %v1212, %v1211
        %v1239 = vpack.c.bf16 %v1214, %v1213
        %v1240 = vpack.c.bf16 %v1216, %v1215
        %v1241 = vpack.c.bf16 %v1218, %v1217
        %v1242 = vpack.c.bf16 %v1220, %v1219
        %v1243 = vpack.c.bf16 %v1222, %v1221
        %v1244 = vpack.c.bf16 %v1224, %v1223
        %v1245 = vpack.c.bf16 %v1226, %v1225
        %v1246 = vpack.c.bf16 %v1228, %v1227
        %v1247 = vpack.c.bf16 %v1230, %v1229
        %v1248 = vpack.c.bf16 %v1232, %v1231
        %1249 = vmatprep.subr.bf16.mxu0 0
        %1250 = vmatpush1.bf16.msra.mxu0 %v1233
        %1251 = vmatprep.subr.bf16.mxu0 0
        %1252 = vmatpush1.bf16.msra.mxu0 %v1234
        %1253 = vmatprep.subr.bf16.mxu0 0
        %1254 = vmatpush1.bf16.msra.mxu0 %v1235
        %1255 = vmatprep.subr.bf16.mxu0 0
        %1256 = vmatpush1.bf16.msra.mxu0 %v1236
        %1257 = vmatprep.subr.bf16.mxu0 0
        %1258 = vmatpush1.bf16.msra.mxu0 %v1237
        %1259 = vmatprep.subr.bf16.mxu0 0
        %1260 = vmatpush1.bf16.msra.mxu0 %v1238
        %1261 = vmatprep.subr.bf16.mxu0 0
        %1262 = vmatpush1.bf16.msra.mxu0 %v1239
        %1263 = vmatprep.subr.bf16.mxu0 0
        %1264 = vmatpush1.bf16.msra.mxu0 %v1240
        %1265 = vmatprep.subr.bf16.mxu0 0
        %1266 = vmatpush1.bf16.msra.mxu0 %v1241
        %1267 = vmatprep.subr.bf16.mxu0 0
        %1268 = vmatpush1.bf16.msra.mxu0 %v1242
        %1269 = vmatprep.subr.bf16.mxu0 0
        %1270 = vmatpush1.bf16.msra.mxu0 %v1243
        %1271 = vmatprep.subr.bf16.mxu0 0
        %1272 = vmatpush1.bf16.msra.mxu0 %v1244
        %1273 = vmatprep.subr.bf16.mxu0 0
        %1274 = vmatpush1.bf16.msra.mxu0 %v1245
        %1275 = vmatprep.subr.bf16.mxu0 0
        %1276 = vmatpush1.bf16.msra.mxu0 %v1246
        %1277 = vmatprep.subr.bf16.mxu0 0
        %1278 = vmatpush1.bf16.msra.mxu0 %v1247
        %1279 = vmatprep.subr.bf16.mxu0 0
        %1280 = vmatpush1.bf16.msra.mxu0 %v1248
        %1281 = vmatprep.mubr.bf16.mxu0 %v569
        %1282 = vmatmul.mubr.bf16.gmra.mrb[0].mxu0 %v568
        %v1283 = vpop.f32.mrb[0].mxu0
        %v1284 = vadd.f32 0.0, %v1283
        %v1285 = vpop.f32.mrb[0].mxu0
        %v1286 = vpop.f32.mrb[0].mxu0
        %v1287 = vadd.f32 0.0, %v1286
        %v1288 = vpop.f32.mrb[0].mxu0
        %1289 = vmatprep.mubr.bf16.mxu0 %v571
        %1290 = vmatmul.mubr.bf16.gmra.mrb[0].mxu0 %v570
        %v1291 = vpop.f32.mrb[0].mxu0
        %v1292 = vadd.f32 0.0, %v1291
        %v1293 = vpop.f32.mrb[0].mxu0
        %v1294 = vpop.f32.mrb[0].mxu0
        %v1295 = vadd.f32 0.0, %v1294
        %v1296 = vpop.f32.mrb[0].mxu0
        %1297 = vmatprep.mubr.bf16.mxu0 %v573
        %1298 = vmatmul.mubr.bf16.gmra.mrb[0].mxu0 %v572
        %v1299 = vpop.f32.mrb[0].mxu0
        %v1300 = vadd.f32 0.0, %v1299
        %v1301 = vpop.f32.mrb[0].mxu0
        %v1302 = vpop.f32.mrb[0].mxu0
        %v1303 = vadd.f32 0.0, %v1302
        %v1304 = vpop.f32.mrb[0].mxu0
        %1305 = vmatprep.mubr.bf16.mxu0 %v575
        %1306 = vmatmul.mubr.bf16.gmra.mrb[0].mxu0 %v574
        %v1307 = vpop.f32.mrb[0].mxu0
        %v1308 = vadd.f32 0.0, %v1307
        %v1309 = vpop.f32.mrb[0].mxu0
        %v1310 = vpop.f32.mrb[0].mxu0
        %v1311 = vadd.f32 0.0, %v1310
        %v1312 = vpop.f32.mrb[0].mxu0
        %1313 = vmatprep.mubr.bf16.mxu0 %v577
        %1314 = vmatmul.mubr.bf16.gmra.mrb[0].mxu0 %v576
        %v1315 = vpop.f32.mrb[0].mxu0
        %v1316 = vadd.f32 0.0, %v1315
        %v1317 = vpop.f32.mrb[0].mxu0
        %v1318 = vpop.f32.mrb[0].mxu0
        %v1319 = vadd.f32 0.0, %v1318
        %v1320 = vpop.f32.mrb[0].mxu0
        %1321 = vmatprep.mubr.bf16.mxu0 %v579
        %1322 = vmatmul.mubr.bf16.gmra.mrb[0].mxu0 %v578
        %v1323 = vpop.f32.mrb[0].mxu0
        %v1324 = vadd.f32 0.0, %v1323
        %v1325 = vpop.f32.mrb[0].mxu0
        %v1326 = vpop.f32.mrb[0].mxu0
        %v1327 = vadd.f32 0.0, %v1326
        %v1328 = vpop.f32.mrb[0].mxu0
        %1329 = vmatprep.mubr.bf16.mxu0 %v581
        %1330 = vmatmul.mubr.bf16.gmra.mrb[0].mxu0 %v580
        %v1331 = vpop.f32.mrb[0].mxu0
        %v1332 = vadd.f32 0.0, %v1331
        %v1333 = vpop.f32.mrb[0].mxu0
        %v1334 = vpop.f32.mrb[0].mxu0
        %v1335 = vadd.f32 0.0, %v1334
        %v1336 = vpop.f32.mrb[0].mxu0
        %1337 = vmatprep.mubr.bf16.mxu0 %v583
        %1338 = vmatmul.mubr.bf16.gmra.mrb[0].mxu0 %v582
        %v1339 = vpop.f32.mrb[0].mxu0
        %v1340 = vadd.f32 0.0, %v1339
        %v1341 = vpop.f32.mrb[0].mxu0
        %v1342 = vpop.f32.mrb[0].mxu0
        %v1343 = vadd.f32 0.0, %v1342
        %v1344 = vpop.f32.mrb[0].mxu0
        %1345 = vmatprep.mubr.bf16.mxu0 %v585
        %1346 = vmatmul.mubr.bf16.gmra.mrb[0].mxu0 %v584
        %v1347 = vpop.f32.mrb[0].mxu0
        %v1348 = vadd.f32 0.0, %v1347
        %v1349 = vpop.f32.mrb[0].mxu0
        %v1350 = vpop.f32.mrb[0].mxu0
        %v1351 = vadd.f32 0.0, %v1350
        %v1352 = vpop.f32.mrb[0].mxu0
        %1353 = vmatprep.mubr.bf16.mxu0 %v587
        %1354 = vmatmul.mubr.bf16.gmra.mrb[0].mxu0 %v586
        %v1355 = vpop.f32.mrb[0].mxu0
        %v1356 = vadd.f32 0.0, %v1355
        %v1357 = vpop.f32.mrb[0].mxu0
        %v1358 = vpop.f32.mrb[0].mxu0
        %v1359 = vadd.f32 0.0, %v1358
        %v1360 = vpop.f32.mrb[0].mxu0
        %1361 = vmatprep.mubr.bf16.mxu0 %v589
        %1362 = vmatmul.mubr.bf16.gmra.mrb[0].mxu0 %v588
        %v1363 = vpop.f32.mrb[0].mxu0
        %v1364 = vadd.f32 0.0, %v1363
        %v1365 = vpop.f32.mrb[0].mxu0
        %v1366 = vpop.f32.mrb[0].mxu0
        %v1367 = vadd.f32 0.0, %v1366
        %v1368 = vpop.f32.mrb[0].mxu0
        %1369 = vmatprep.mubr.bf16.mxu0 %v591
        %1370 = vmatmul.mubr.bf16.gmra.mrb[0].mxu0 %v590
        %v1371 = vpop.f32.mrb[0].mxu0
        %v1372 = vadd.f32 0.0, %v1371
        %v1373 = vpop.f32.mrb[0].mxu0
        %v1374 = vpop.f32.mrb[0].mxu0
        %v1375 = vadd.f32 0.0, %v1374
        %v1376 = vpop.f32.mrb[0].mxu0
        %1377 = vmatprep.mubr.bf16.mxu0 %v593
        %1378 = vmatmul.mubr.bf16.gmra.mrb[0].mxu0 %v592
        %v1379 = vpop.f32.mrb[0].mxu0
        %v1380 = vadd.f32 0.0, %v1379
        %v1381 = vpop.f32.mrb[0].mxu0
        %v1382 = vpop.f32.mrb[0].mxu0
        %v1383 = vadd.f32 0.0, %v1382
        %v1384 = vpop.f32.mrb[0].mxu0
        %1385 = vmatprep.mubr.bf16.mxu0 %v595
        %1386 = vmatmul.mubr.bf16.gmra.mrb[0].mxu0 %v594
        %v1387 = vpop.f32.mrb[0].mxu0
        %v1388 = vadd.f32 0.0, %v1387
        %v1389 = vpop.f32.mrb[0].mxu0
        %v1390 = vpop.f32.mrb[0].mxu0
        %v1391 = vadd.f32 0.0, %v1390
        %v1392 = vpop.f32.mrb[0].mxu0
        %1393 = vmatprep.mubr.bf16.mxu0 %v597
        %1394 = vmatmul.mubr.bf16.gmra.mrb[0].mxu0 %v596
        %v1395 = vpop.f32.mrb[0].mxu0
        %v1396 = vadd.f32 0.0, %v1395
        %v1397 = vpop.f32.mrb[0].mxu0
        %v1398 = vpop.f32.mrb[0].mxu0
        %v1399 = vadd.f32 0.0, %v1398
        %v1400 = vpop.f32.mrb[0].mxu0
        %1401 = vmatprep.mubr.bf16.mxu0 %v599
        %1402 = vmatmul.mubr.bf16.gmra.mrb[0].mxu0 %v598
        %v1403 = vpop.f32.mrb[0].mxu0
        %v1404 = vadd.f32 0.0, %v1403
        %v1405 = vpop.f32.mrb[0].mxu0
        %v1406 = vpop.f32.mrb[0].mxu0
        %v1407 = vadd.f32 0.0, %v1406
        %v1408 = vpop.f32.mrb[0].mxu0
        %1409 = vdwg.mxu0
        %v1410 = vpack.c.bf16 %v1287, %v1284
        %v1411 = vpack.c.bf16 %v1295, %v1292
        %v1412 = vpack.c.bf16 %v1303, %v1300
        %v1413 = vpack.c.bf16 %v1311, %v1308
        %v1414 = vpack.c.bf16 %v1319, %v1316
        %v1415 = vpack.c.bf16 %v1327, %v1324
        %v1416 = vpack.c.bf16 %v1335, %v1332
        %v1417 = vpack.c.bf16 %v1343, %v1340
        %v1418 = vpack.c.bf16 %v1351, %v1348
        %v1419 = vpack.c.bf16 %v1359, %v1356
        %v1420 = vpack.c.bf16 %v1367, %v1364
        %v1421 = vpack.c.bf16 %v1375, %v1372
        %v1422 = vpack.c.bf16 %v1383, %v1380
        %v1423 = vpack.c.bf16 %v1391, %v1388
        %v1424 = vpack.c.bf16 %v1399, %v1396
        %v1425 = vpack.c.bf16 %v1407, %v1404
        %v1426 = vld [vmem:[#allocation8] sm:$0xf]
        %v1427 = vld [vmem:[#allocation8 + $0x4] sm:$0xf]
        %v1428 = vld [vmem:[#allocation8 + $0x8] sm:$0xf]
        %v1429 = vld [vmem:[#allocation8 + $0xc] sm:$0xf]
        %v1430 = vld [vmem:[#allocation8 + $0x10] sm:$0xf]
        %v1431 = vld [vmem:[#allocation8 + $0x14] sm:$0xf]
        %v1432 = vld [vmem:[#allocation8 + $0x18] sm:$0xf]
        %v1433 = vld [vmem:[#allocation8 + $0x1c] sm:$0xf]
        %v1434 = vld [vmem:[#allocation8 + $0x20] sm:$0xf]
        %v1435 = vld [vmem:[#allocation8 + $0x24] sm:$0xf]
        %v1436 = vld [vmem:[#allocation8 + $0x28] sm:$0xf]
        %v1437 = vld [vmem:[#allocation8 + $0x2c] sm:$0xf]
        %v1438 = vld [vmem:[#allocation8 + $0x30] sm:$0xf]
        %v1439 = vld [vmem:[#allocation8 + $0x34] sm:$0xf]
        %v1440 = vld [vmem:[#allocation8 + $0x38] sm:$0xf]
        %v1441 = vld [vmem:[#allocation8 + $0x3c] sm:$0xf]
        %v1442 = vld [vmem:[%s5] sm:$0x1]
        %v1444 = vlaneseq
        %v1445 = vshrl.u32 %v1444, 7
        %v1446 = vsub.s32 0, %v1445
        %v1447 = vrot.slane %v1442, %v1446
        %v1465 = vunpack.c.l.b16 %v1426
        %v1466 = vunpack.c.l.b16 %v1427
        %v1467 = vunpack.c.l.b16 %v1428
        %v1468 = vunpack.c.l.b16 %v1429
        %v1469 = vunpack.c.l.b16 %v1430
        %v1470 = vunpack.c.l.b16 %v1431
        %v1471 = vunpack.c.l.b16 %v1432
        %v1472 = vunpack.c.l.b16 %v1433
        %v1473 = vunpack.c.l.b16 %v1434
        %v1474 = vunpack.c.l.b16 %v1435
        %v1475 = vunpack.c.l.b16 %v1436
        %v1476 = vunpack.c.l.b16 %v1437
        %v1477 = vunpack.c.l.b16 %v1438
        %v1478 = vunpack.c.l.b16 %v1439
        %v1479 = vunpack.c.l.b16 %v1440
        %v1480 = vunpack.c.l.b16 %v1441
        %v1481 = vpack.c.b16 %v1466, %v1465
        %v1482 = vpack.c.b16 %v1468, %v1467
        %v1483 = vpack.c.b16 %v1470, %v1469
        %v1484 = vpack.c.b16 %v1472, %v1471
        %v1485 = vpack.c.b16 %v1474, %v1473
        %v1486 = vpack.c.b16 %v1476, %v1475
        %v1487 = vpack.c.b16 %v1478, %v1477
        %v1488 = vpack.c.b16 %v1480, %v1479
        %1497 = vmatprep.subr.bf16.mxu0 0
        %1498 = vmatpush1.bf16.msra.mxu0 %v1481
        %1499 = vmatprep.subr.bf16.mxu0 0
        %1500 = vmatpush1.bf16.msra.mxu0 %v1482
        %1501 = vmatprep.subr.bf16.mxu0 0
        %1502 = vmatpush1.bf16.msra.mxu0 %v1483
        %1503 = vmatprep.subr.bf16.mxu0 0
        %1504 = vmatpush1.bf16.msra.mxu0 %v1484
        %1505 = vmatprep.subr.bf16.mxu0 0
        %1506 = vmatpush1.bf16.msra.mxu0 %v1485
        %1507 = vmatprep.subr.bf16.mxu0 0
        %1508 = vmatpush1.bf16.msra.mxu0 %v1486
        %1509 = vmatprep.subr.bf16.mxu0 0
        %1510 = vmatpush1.bf16.msra.mxu0 %v1487
        %1511 = vmatprep.subr.bf16.mxu0 0
        %1512 = vmatpush1.bf16.msra.mxu0 %v1488
        %1513 = vmatprep.subr.bf16.mxu0 0
        %1514 = vmatpush1.bf16.msra.mxu0 0
        %1515 = vmatprep.subr.bf16.mxu0 0
        %1516 = vmatpush1.bf16.msra.mxu0 0
        %1517 = vmatprep.subr.bf16.mxu0 0
        %1518 = vmatpush1.bf16.msra.mxu0 0
        %1519 = vmatprep.subr.bf16.mxu0 0
        %1520 = vmatpush1.bf16.msra.mxu0 0
        %1521 = vmatprep.subr.bf16.mxu0 0
        %1522 = vmatpush1.bf16.msra.mxu0 0
        %1523 = vmatprep.subr.bf16.mxu0 0
        %1524 = vmatpush1.bf16.msra.mxu0 0
        %1525 = vmatprep.subr.bf16.mxu0 0
        %1526 = vmatpush1.bf16.msra.mxu0 0
        %1527 = vmatprep.subr.bf16.mxu0 0
        %1528 = vmatpush1.bf16.msra.mxu0 0
        %1529 = vmatprep.mubr.bf16.mxu0 0
        %1530 = vmatmul.mubr.bf16.gmra.mrb[0].mxu0 %v1410
        %v1531 = vpop.f32.mrb[0].mxu0
        %v1532 = vadd.f32 %v1447, %v1531
        %v1533 = vpop.f32.mrb[0].mxu0
        %v1534 = vpop.f32.mrb[0].mxu0
        %v1535 = vadd.f32 %v1447, %v1534
        %v1536 = vpop.f32.mrb[0].mxu0
        %1537 = vmatprep.mubr.bf16.mxu0 0
        %1538 = vmatmul.mubr.bf16.gmra.mrb[0].mxu0 %v1411
        %v1539 = vpop.f32.mrb[0].mxu0
        %v1540 = vadd.f32 %v1447, %v1539
        %v1541 = vpop.f32.mrb[0].mxu0
        %v1542 = vpop.f32.mrb[0].mxu0
        %v1543 = vadd.f32 %v1447, %v1542
        %v1544 = vpop.f32.mrb[0].mxu0
        %1545 = vmatprep.mubr.bf16.mxu0 0
        %1546 = vmatmul.mubr.bf16.gmra.mrb[0].mxu0 %v1412
        %v1547 = vpop.f32.mrb[0].mxu0
        %v1548 = vadd.f32 %v1447, %v1547
        %v1549 = vpop.f32.mrb[0].mxu0
        %v1550 = vpop.f32.mrb[0].mxu0
        %v1551 = vadd.f32 %v1447, %v1550
        %v1552 = vpop.f32.mrb[0].mxu0
        %1553 = vmatprep.mubr.bf16.mxu0 0
        %1554 = vmatmul.mubr.bf16.gmra.mrb[0].mxu0 %v1413
        %v1555 = vpop.f32.mrb[0].mxu0
        %v1556 = vadd.f32 %v1447, %v1555
        %v1557 = vpop.f32.mrb[0].mxu0
        %v1558 = vpop.f32.mrb[0].mxu0
        %v1559 = vadd.f32 %v1447, %v1558
        %v1560 = vpop.f32.mrb[0].mxu0
        %1561 = vmatprep.mubr.bf16.mxu0 0
        %1562 = vmatmul.mubr.bf16.gmra.mrb[0].mxu0 %v1414
        %v1563 = vpop.f32.mrb[0].mxu0
        %v1564 = vadd.f32 %v1447, %v1563
        %v1565 = vpop.f32.mrb[0].mxu0
        %v1566 = vpop.f32.mrb[0].mxu0
        %v1567 = vadd.f32 %v1447, %v1566
        %v1568 = vpop.f32.mrb[0].mxu0
        %1569 = vmatprep.mubr.bf16.mxu0 0
        %1570 = vmatmul.mubr.bf16.gmra.mrb[0].mxu0 %v1415
        %v1571 = vpop.f32.mrb[0].mxu0
        %v1572 = vadd.f32 %v1447, %v1571
        %v1573 = vpop.f32.mrb[0].mxu0
        %v1574 = vpop.f32.mrb[0].mxu0
        %v1575 = vadd.f32 %v1447, %v1574
        %v1576 = vpop.f32.mrb[0].mxu0
        %1577 = vmatprep.mubr.bf16.mxu0 0
        %1578 = vmatmul.mubr.bf16.gmra.mrb[0].mxu0 %v1416
        %v1579 = vpop.f32.mrb[0].mxu0
        %v1580 = vadd.f32 %v1447, %v1579
        %v1581 = vpop.f32.mrb[0].mxu0
        %v1582 = vpop.f32.mrb[0].mxu0
        %v1583 = vadd.f32 %v1447, %v1582
        %v1584 = vpop.f32.mrb[0].mxu0
        %1585 = vmatprep.mubr.bf16.mxu0 0
        %1586 = vmatmul.mubr.bf16.gmra.mrb[0].mxu0 %v1417
        %v1587 = vpop.f32.mrb[0].mxu0
        %v1588 = vadd.f32 %v1447, %v1587
        %v1589 = vpop.f32.mrb[0].mxu0
        %v1590 = vpop.f32.mrb[0].mxu0
        %v1591 = vadd.f32 %v1447, %v1590
        %v1592 = vpop.f32.mrb[0].mxu0
        %1593 = vmatprep.mubr.bf16.mxu0 0
        %1594 = vmatmul.mubr.bf16.gmra.mrb[0].mxu0 %v1418
        %v1595 = vpop.f32.mrb[0].mxu0
        %v1596 = vadd.f32 %v1447, %v1595
        %v1597 = vpop.f32.mrb[0].mxu0
        %v1598 = vpop.f32.mrb[0].mxu0
        %v1599 = vadd.f32 %v1447, %v1598
        %v1600 = vpop.f32.mrb[0].mxu0
        %1601 = vmatprep.mubr.bf16.mxu0 0
        %1602 = vmatmul.mubr.bf16.gmra.mrb[0].mxu0 %v1419
        %v1603 = vpop.f32.mrb[0].mxu0
        %v1604 = vadd.f32 %v1447, %v1603
        %v1605 = vpop.f32.mrb[0].mxu0
        %v1606 = vpop.f32.mrb[0].mxu0
        %v1607 = vadd.f32 %v1447, %v1606
        %v1608 = vpop.f32.mrb[0].mxu0
        %1609 = vmatprep.mubr.bf16.mxu0 0
        %1610 = vmatmul.mubr.bf16.gmra.mrb[0].mxu0 %v1420
        %v1611 = vpop.f32.mrb[0].mxu0
        %v1612 = vadd.f32 %v1447, %v1611
        %v1613 = vpop.f32.mrb[0].mxu0
        %v1614 = vpop.f32.mrb[0].mxu0
        %v1615 = vadd.f32 %v1447, %v1614
        %v1616 = vpop.f32.mrb[0].mxu0
        %1617 = vmatprep.mubr.bf16.mxu0 0
        %1618 = vmatmul.mubr.bf16.gmra.mrb[0].mxu0 %v1421
        %v1619 = vpop.f32.mrb[0].mxu0
        %v1620 = vadd.f32 %v1447, %v1619
        %v1621 = vpop.f32.mrb[0].mxu0
        %v1622 = vpop.f32.mrb[0].mxu0
        %v1623 = vadd.f32 %v1447, %v1622
        %v1624 = vpop.f32.mrb[0].mxu0
        %1625 = vmatprep.mubr.bf16.mxu0 0
        %1626 = vmatmul.mubr.bf16.gmra.mrb[0].mxu0 %v1422
        %v1627 = vpop.f32.mrb[0].mxu0
        %v1628 = vadd.f32 %v1447, %v1627
        %v1629 = vpop.f32.mrb[0].mxu0
        %v1630 = vpop.f32.mrb[0].mxu0
        %v1631 = vadd.f32 %v1447, %v1630
        %v1632 = vpop.f32.mrb[0].mxu0
        %1633 = vmatprep.mubr.bf16.mxu0 0
        %1634 = vmatmul.mubr.bf16.gmra.mrb[0].mxu0 %v1423
        %v1635 = vpop.f32.mrb[0].mxu0
        %v1636 = vadd.f32 %v1447, %v1635
        %v1637 = vpop.f32.mrb[0].mxu0
        %v1638 = vpop.f32.mrb[0].mxu0
        %v1639 = vadd.f32 %v1447, %v1638
        %v1640 = vpop.f32.mrb[0].mxu0
        %1641 = vmatprep.mubr.bf16.mxu0 0
        %1642 = vmatmul.mubr.bf16.gmra.mrb[0].mxu0 %v1424
        %v1643 = vpop.f32.mrb[0].mxu0
        %v1644 = vadd.f32 %v1447, %v1643
        %v1645 = vpop.f32.mrb[0].mxu0
        %v1646 = vpop.f32.mrb[0].mxu0
        %v1647 = vadd.f32 %v1447, %v1646
        %v1648 = vpop.f32.mrb[0].mxu0
        %1649 = vmatprep.mubr.bf16.mxu0 0
        %1650 = vmatmul.mubr.bf16.gmra.mrb[0].mxu0 %v1425
        %v1651 = vpop.f32.mrb[0].mxu0
        %v1652 = vadd.f32 %v1447, %v1651
        %v1653 = vpop.f32.mrb[0].mxu0
        %v1654 = vpop.f32.mrb[0].mxu0
        %v1655 = vadd.f32 %v1447, %v1654
        %v1656 = vpop.f32.mrb[0].mxu0
        %1657 = vdwg.mxu0
        %v1658 = vmax.f32 %v1532, 0.0
        %v1659 = vmax.f32 %v1535, 0.0
        %v1660 = vmax.f32 %v1540, 0.0
        %v1661 = vmax.f32 %v1543, 0.0
        %v1662 = vmax.f32 %v1548, 0.0
        %v1663 = vmax.f32 %v1551, 0.0
        %v1664 = vmax.f32 %v1556, 0.0
        %v1665 = vmax.f32 %v1559, 0.0
        %v1666 = vmax.f32 %v1564, 0.0
        %v1667 = vmax.f32 %v1567, 0.0
        %v1668 = vmax.f32 %v1572, 0.0
        %v1669 = vmax.f32 %v1575, 0.0
        %v1670 = vmax.f32 %v1580, 0.0
        %v1671 = vmax.f32 %v1583, 0.0
        %v1672 = vmax.f32 %v1588, 0.0
        %v1673 = vmax.f32 %v1591, 0.0
        %v1674 = vmax.f32 %v1596, 0.0
        %v1675 = vmax.f32 %v1599, 0.0
        %v1676 = vmax.f32 %v1604, 0.0
        %v1677 = vmax.f32 %v1607, 0.0
        %v1678 = vmax.f32 %v1612, 0.0
        %v1679 = vmax.f32 %v1615, 0.0
        %v1680 = vmax.f32 %v1620, 0.0
        %v1681 = vmax.f32 %v1623, 0.0
        %v1682 = vmax.f32 %v1628, 0.0
        %v1683 = vmax.f32 %v1631, 0.0
        %v1684 = vmax.f32 %v1636, 0.0
        %v1685 = vmax.f32 %v1639, 0.0
        %v1686 = vmax.f32 %v1644, 0.0
        %v1687 = vmax.f32 %v1647, 0.0
        %v1688 = vmax.f32 %v1652, 0.0
        %v1689 = vmax.f32 %v1655, 0.0
        %v1690 = vpack.c.bf16 %v1659, %v1658
        %v1691 = vpack.c.bf16 %v1661, %v1660
        %v1692 = vpack.c.bf16 %v1663, %v1662
        %v1693 = vpack.c.bf16 %v1665, %v1664
        %v1694 = vpack.c.bf16 %v1667, %v1666
        %v1695 = vpack.c.bf16 %v1669, %v1668
        %v1696 = vpack.c.bf16 %v1671, %v1670
        %v1697 = vpack.c.bf16 %v1673, %v1672
        %v1698 = vpack.c.bf16 %v1675, %v1674
        %v1699 = vpack.c.bf16 %v1677, %v1676
        %v1700 = vpack.c.bf16 %v1679, %v1678
        %v1701 = vpack.c.bf16 %v1681, %v1680
        %v1702 = vpack.c.bf16 %v1683, %v1682
        %v1703 = vpack.c.bf16 %v1685, %v1684
        %v1704 = vpack.c.bf16 %v1687, %v1686
        %v1705 = vpack.c.bf16 %v1689, %v1688
        %1706 = vmatprep.subr.bf16.mxu0 0
        %1707 = vmatpush1.bf16.msra.mxu0 %v1690
        %1708 = vmatprep.subr.bf16.mxu0 0
        %1709 = vmatpush1.bf16.msra.mxu0 %v1691
        %1710 = vmatprep.subr.bf16.mxu0 0
        %1711 = vmatpush1.bf16.msra.mxu0 %v1692
        %1712 = vmatprep.subr.bf16.mxu0 0
        %1713 = vmatpush1.bf16.msra.mxu0 %v1693
        %1714 = vmatprep.subr.bf16.mxu0 0
        %1715 = vmatpush1.bf16.msra.mxu0 %v1694
        %1716 = vmatprep.subr.bf16.mxu0 0
        %1717 = vmatpush1.bf16.msra.mxu0 %v1695
        %1718 = vmatprep.subr.bf16.mxu0 0
        %1719 = vmatpush1.bf16.msra.mxu0 %v1696
        %1720 = vmatprep.subr.bf16.mxu0 0
        %1721 = vmatpush1.bf16.msra.mxu0 %v1697
        %1722 = vmatprep.subr.bf16.mxu0 0
        %1723 = vmatpush1.bf16.msra.mxu0 %v1698
        %1724 = vmatprep.subr.bf16.mxu0 0
        %1725 = vmatpush1.bf16.msra.mxu0 %v1699
        %1726 = vmatprep.subr.bf16.mxu0 0
        %1727 = vmatpush1.bf16.msra.mxu0 %v1700
        %1728 = vmatprep.subr.bf16.mxu0 0
        %1729 = vmatpush1.bf16.msra.mxu0 %v1701
        %1730 = vmatprep.subr.bf16.mxu0 0
        %1731 = vmatpush1.bf16.msra.mxu0 %v1702
        %1732 = vmatprep.subr.bf16.mxu0 0
        %1733 = vmatpush1.bf16.msra.mxu0 %v1703
        %1734 = vmatprep.subr.bf16.mxu0 0
        %1735 = vmatpush1.bf16.msra.mxu0 %v1704
        %1736 = vmatprep.subr.bf16.mxu0 0
        %1737 = vmatpush1.bf16.msra.mxu0 %v1705
        %1738 = vmatprep.mubr.bf16.mxu0 %v569
        %1739 = vmatmul.mubr.bf16.gmra.mrb[0].mxu0 %v568
        %v1740 = vpop.f32.mrb[0].mxu0
        %v1741 = vadd.f32 0.0, %v1740
        %v1742 = vpop.f32.mrb[0].mxu0
        %v1743 = vpop.f32.mrb[0].mxu0
        %v1744 = vadd.f32 0.0, %v1743
        %v1745 = vpop.f32.mrb[0].mxu0
        %1746 = vmatprep.mubr.bf16.mxu0 %v571
        %1747 = vmatmul.mubr.bf16.gmra.mrb[0].mxu0 %v570
        %v1748 = vpop.f32.mrb[0].mxu0
        %v1749 = vadd.f32 0.0, %v1748
        %v1750 = vpop.f32.mrb[0].mxu0
        %v1751 = vpop.f32.mrb[0].mxu0
        %v1752 = vadd.f32 0.0, %v1751
        %v1753 = vpop.f32.mrb[0].mxu0
        %1754 = vmatprep.mubr.bf16.mxu0 %v573
        %1755 = vmatmul.mubr.bf16.gmra.mrb[0].mxu0 %v572
        %v1756 = vpop.f32.mrb[0].mxu0
        %v1757 = vadd.f32 0.0, %v1756
        %v1758 = vpop.f32.mrb[0].mxu0
        %v1759 = vpop.f32.mrb[0].mxu0
        %v1760 = vadd.f32 0.0, %v1759
        %v1761 = vpop.f32.mrb[0].mxu0
        %1762 = vmatprep.mubr.bf16.mxu0 %v575
        %1763 = vmatmul.mubr.bf16.gmra.mrb[0].mxu0 %v574
        %v1764 = vpop.f32.mrb[0].mxu0
        %v1765 = vadd.f32 0.0, %v1764
        %v1766 = vpop.f32.mrb[0].mxu0
        %v1767 = vpop.f32.mrb[0].mxu0
        %v1768 = vadd.f32 0.0, %v1767
        %v1769 = vpop.f32.mrb[0].mxu0
        %1770 = vmatprep.mubr.bf16.mxu0 %v577
        %1771 = vmatmul.mubr.bf16.gmra.mrb[0].mxu0 %v576
        %v1772 = vpop.f32.mrb[0].mxu0
        %v1773 = vadd.f32 0.0, %v1772
        %v1774 = vpop.f32.mrb[0].mxu0
        %v1775 = vpop.f32.mrb[0].mxu0
        %v1776 = vadd.f32 0.0, %v1775
        %v1777 = vpop.f32.mrb[0].mxu0
        %1778 = vmatprep.mubr.bf16.mxu0 %v579
        %1779 = vmatmul.mubr.bf16.gmra.mrb[0].mxu0 %v578
        %v1780 = vpop.f32.mrb[0].mxu0
        %v1781 = vadd.f32 0.0, %v1780
        %v1782 = vpop.f32.mrb[0].mxu0
        %v1783 = vpop.f32.mrb[0].mxu0
        %v1784 = vadd.f32 0.0, %v1783
        %v1785 = vpop.f32.mrb[0].mxu0
        %1786 = vmatprep.mubr.bf16.mxu0 %v581
        %1787 = vmatmul.mubr.bf16.gmra.mrb[0].mxu0 %v580
        %v1788 = vpop.f32.mrb[0].mxu0
        %v1789 = vadd.f32 0.0, %v1788
        %v1790 = vpop.f32.mrb[0].mxu0
        %v1791 = vpop.f32.mrb[0].mxu0
        %v1792 = vadd.f32 0.0, %v1791
        %v1793 = vpop.f32.mrb[0].mxu0
        %1794 = vmatprep.mubr.bf16.mxu0 %v583
        %1795 = vmatmul.mubr.bf16.gmra.mrb[0].mxu0 %v582
        %v1796 = vpop.f32.mrb[0].mxu0
        %v1797 = vadd.f32 0.0, %v1796
        %v1798 = vpop.f32.mrb[0].mxu0
        %v1799 = vpop.f32.mrb[0].mxu0
        %v1800 = vadd.f32 0.0, %v1799
        %v1801 = vpop.f32.mrb[0].mxu0
        %1802 = vmatprep.mubr.bf16.mxu0 %v585
        %1803 = vmatmul.mubr.bf16.gmra.mrb[0].mxu0 %v584
        %v1804 = vpop.f32.mrb[0].mxu0
        %v1805 = vadd.f32 0.0, %v1804
        %v1806 = vpop.f32.mrb[0].mxu0
        %v1807 = vpop.f32.mrb[0].mxu0
        %v1808 = vadd.f32 0.0, %v1807
        %v1809 = vpop.f32.mrb[0].mxu0
        %1810 = vmatprep.mubr.bf16.mxu0 %v587
        %1811 = vmatmul.mubr.bf16.gmra.mrb[0].mxu0 %v586
        %v1812 = vpop.f32.mrb[0].mxu0
        %v1813 = vadd.f32 0.0, %v1812
        %v1814 = vpop.f32.mrb[0].mxu0
        %v1815 = vpop.f32.mrb[0].mxu0
        %v1816 = vadd.f32 0.0, %v1815
        %v1817 = vpop.f32.mrb[0].mxu0
        %1818 = vmatprep.mubr.bf16.mxu0 %v589
        %1819 = vmatmul.mubr.bf16.gmra.mrb[0].mxu0 %v588
        %v1820 = vpop.f32.mrb[0].mxu0
        %v1821 = vadd.f32 0.0, %v1820
        %v1822 = vpop.f32.mrb[0].mxu0
        %v1823 = vpop.f32.mrb[0].mxu0
        %v1824 = vadd.f32 0.0, %v1823
        %v1825 = vpop.f32.mrb[0].mxu0
        %1826 = vmatprep.mubr.bf16.mxu0 %v591
        %1827 = vmatmul.mubr.bf16.gmra.mrb[0].mxu0 %v590
        %v1828 = vpop.f32.mrb[0].mxu0
        %v1829 = vadd.f32 0.0, %v1828
        %v1830 = vpop.f32.mrb[0].mxu0
        %v1831 = vpop.f32.mrb[0].mxu0
        %v1832 = vadd.f32 0.0, %v1831
        %v1833 = vpop.f32.mrb[0].mxu0
        %1834 = vmatprep.mubr.bf16.mxu0 %v593
        %1835 = vmatmul.mubr.bf16.gmra.mrb[0].mxu0 %v592
        %v1836 = vpop.f32.mrb[0].mxu0
        %v1837 = vadd.f32 0.0, %v1836
        %v1838 = vpop.f32.mrb[0].mxu0
        %v1839 = vpop.f32.mrb[0].mxu0
        %v1840 = vadd.f32 0.0, %v1839
        %v1841 = vpop.f32.mrb[0].mxu0
        %1842 = vmatprep.mubr.bf16.mxu0 %v595
        %1843 = vmatmul.mubr.bf16.gmra.mrb[0].mxu0 %v594
        %v1844 = vpop.f32.mrb[0].mxu0
        %v1845 = vadd.f32 0.0, %v1844
        %v1846 = vpop.f32.mrb[0].mxu0
        %v1847 = vpop.f32.mrb[0].mxu0
        %v1848 = vadd.f32 0.0, %v1847
        %v1849 = vpop.f32.mrb[0].mxu0
        %1850 = vmatprep.mubr.bf16.mxu0 %v597
        %1851 = vmatmul.mubr.bf16.gmra.mrb[0].mxu0 %v596
        %v1852 = vpop.f32.mrb[0].mxu0
        %v1853 = vadd.f32 0.0, %v1852
        %v1854 = vpop.f32.mrb[0].mxu0
        %v1855 = vpop.f32.mrb[0].mxu0
        %v1856 = vadd.f32 0.0, %v1855
        %v1857 = vpop.f32.mrb[0].mxu0
        %1858 = vmatprep.mubr.bf16.mxu0 %v599
        %1859 = vmatmul.mubr.bf16.gmra.mrb[0].mxu0 %v598
        %v1860 = vpop.f32.mrb[0].mxu0
        %v1861 = vadd.f32 0.0, %v1860
        %v1862 = vpop.f32.mrb[0].mxu0
        %v1863 = vpop.f32.mrb[0].mxu0
        %v1864 = vadd.f32 0.0, %v1863
        %v1865 = vpop.f32.mrb[0].mxu0
        %1866 = vdwg.mxu0
        %v1867 = vpack.c.bf16 %v1744, %v1741
        %v1868 = vpack.c.bf16 %v1752, %v1749
        %v1869 = vpack.c.bf16 %v1760, %v1757
        %v1870 = vpack.c.bf16 %v1768, %v1765
        %v1871 = vpack.c.bf16 %v1776, %v1773
        %v1872 = vpack.c.bf16 %v1784, %v1781
        %v1873 = vpack.c.bf16 %v1792, %v1789
        %v1874 = vpack.c.bf16 %v1800, %v1797
        %v1875 = vpack.c.bf16 %v1808, %v1805
        %v1876 = vpack.c.bf16 %v1816, %v1813
        %v1877 = vpack.c.bf16 %v1824, %v1821
        %v1878 = vpack.c.bf16 %v1832, %v1829
        %v1879 = vpack.c.bf16 %v1840, %v1837
        %v1880 = vpack.c.bf16 %v1848, %v1845
        %v1881 = vpack.c.bf16 %v1856, %v1853
        %v1882 = vpack.c.bf16 %v1864, %v1861
        %v1883 = vld [vmem:[#allocation10] sm:$0xf]
        %v1884 = vld [vmem:[#allocation10 + $0x4] sm:$0xf]
        %v1885 = vld [vmem:[#allocation10 + $0x8] sm:$0xf]
        %v1886 = vld [vmem:[#allocation10 + $0xc] sm:$0xf]
        %v1887 = vld [vmem:[#allocation10 + $0x10] sm:$0xf]
        %v1888 = vld [vmem:[#allocation10 + $0x14] sm:$0xf]
        %v1889 = vld [vmem:[#allocation10 + $0x18] sm:$0xf]
        %v1890 = vld [vmem:[#allocation10 + $0x1c] sm:$0xf]
        %v1891 = vld [vmem:[#allocation10 + $0x20] sm:$0xf]
        %v1892 = vld [vmem:[#allocation10 + $0x24] sm:$0xf]
        %v1893 = vld [vmem:[#allocation10 + $0x28] sm:$0xf]
        %v1894 = vld [vmem:[#allocation10 + $0x2c] sm:$0xf]
        %v1895 = vld [vmem:[#allocation10 + $0x30] sm:$0xf]
        %v1896 = vld [vmem:[#allocation10 + $0x34] sm:$0xf]
        %v1897 = vld [vmem:[#allocation10 + $0x38] sm:$0xf]
        %v1898 = vld [vmem:[#allocation10 + $0x3c] sm:$0xf]
        %v1899 = vld [vmem:[%s7] sm:$0x1]
        %v1901 = vlaneseq
        %v1902 = vshrl.u32 %v1901, 7
        %v1903 = vsub.s32 0, %v1902
        %v1904 = vrot.slane %v1899, %v1903
        %v1922 = vunpack.c.l.b16 %v1883
        %v1923 = vunpack.c.l.b16 %v1884
        %v1924 = vunpack.c.l.b16 %v1885
        %v1925 = vunpack.c.l.b16 %v1886
        %v1926 = vunpack.c.l.b16 %v1887
        %v1927 = vunpack.c.l.b16 %v1888
        %v1928 = vunpack.c.l.b16 %v1889
        %v1929 = vunpack.c.l.b16 %v1890
        %v1930 = vunpack.c.l.b16 %v1891
        %v1931 = vunpack.c.l.b16 %v1892
        %v1932 = vunpack.c.l.b16 %v1893
        %v1933 = vunpack.c.l.b16 %v1894
        %v1934 = vunpack.c.l.b16 %v1895
        %v1935 = vunpack.c.l.b16 %v1896
        %v1936 = vunpack.c.l.b16 %v1897
        %v1937 = vunpack.c.l.b16 %v1898
        %v1938 = vpack.c.b16 %v1923, %v1922
        %v1939 = vpack.c.b16 %v1925, %v1924
        %v1940 = vpack.c.b16 %v1927, %v1926
        %v1941 = vpack.c.b16 %v1929, %v1928
        %v1942 = vpack.c.b16 %v1931, %v1930
        %v1943 = vpack.c.b16 %v1933, %v1932
        %v1944 = vpack.c.b16 %v1935, %v1934
        %v1945 = vpack.c.b16 %v1937, %v1936
        %1954 = vmatprep.subr.bf16.mxu0 0
        %1955 = vmatpush1.bf16.msra.mxu0 %v1938
        %1956 = vmatprep.subr.bf16.mxu0 0
        %1957 = vmatpush1.bf16.msra.mxu0 %v1939
        %1958 = vmatprep.subr.bf16.mxu0 0
        %1959 = vmatpush1.bf16.msra.mxu0 %v1940
        %1960 = vmatprep.subr.bf16.mxu0 0
        %1961 = vmatpush1.bf16.msra.mxu0 %v1941
        %1962 = vmatprep.subr.bf16.mxu0 0
        %1963 = vmatpush1.bf16.msra.mxu0 %v1942
        %1964 = vmatprep.subr.bf16.mxu0 0
        %1965 = vmatpush1.bf16.msra.mxu0 %v1943
        %1966 = vmatprep.subr.bf16.mxu0 0
        %1967 = vmatpush1.bf16.msra.mxu0 %v1944
        %1968 = vmatprep.subr.bf16.mxu0 0
        %1969 = vmatpush1.bf16.msra.mxu0 %v1945
        %1970 = vmatprep.subr.bf16.mxu0 0
        %1971 = vmatpush1.bf16.msra.mxu0 0
        %1972 = vmatprep.subr.bf16.mxu0 0
        %1973 = vmatpush1.bf16.msra.mxu0 0
        %1974 = vmatprep.subr.bf16.mxu0 0
        %1975 = vmatpush1.bf16.msra.mxu0 0
        %1976 = vmatprep.subr.bf16.mxu0 0
        %1977 = vmatpush1.bf16.msra.mxu0 0
        %1978 = vmatprep.subr.bf16.mxu0 0
        %1979 = vmatpush1.bf16.msra.mxu0 0
        %1980 = vmatprep.subr.bf16.mxu0 0
        %1981 = vmatpush1.bf16.msra.mxu0 0
        %1982 = vmatprep.subr.bf16.mxu0 0
        %1983 = vmatpush1.bf16.msra.mxu0 0
        %1984 = vmatprep.subr.bf16.mxu0 0
        %1985 = vmatpush1.bf16.msra.mxu0 0
        %1986 = vmatprep.mubr.bf16.mxu0 0
        %1987 = vmatmul.mubr.bf16.gmra.mrb[0].mxu0 %v1867
        %v1988 = vpop.f32.mrb[0].mxu0
        %v1989 = vadd.f32 %v1904, %v1988
        %v1990 = vpop.f32.mrb[0].mxu0
        %v1991 = vpop.f32.mrb[0].mxu0
        %v1992 = vadd.f32 %v1904, %v1991
        %v1993 = vpop.f32.mrb[0].mxu0
        %1994 = vmatprep.mubr.bf16.mxu0 0
        %1995 = vmatmul.mubr.bf16.gmra.mrb[0].mxu0 %v1868
        %v1996 = vpop.f32.mrb[0].mxu0
        %v1997 = vadd.f32 %v1904, %v1996
        %v1998 = vpop.f32.mrb[0].mxu0
        %v1999 = vpop.f32.mrb[0].mxu0
        %v2000 = vadd.f32 %v1904, %v1999
        %v2001 = vpop.f32.mrb[0].mxu0
        %2002 = vmatprep.mubr.bf16.mxu0 0
        %2003 = vmatmul.mubr.bf16.gmra.mrb[0].mxu0 %v1869
        %v2004 = vpop.f32.mrb[0].mxu0
        %v2005 = vadd.f32 %v1904, %v2004
        %v2006 = vpop.f32.mrb[0].mxu0
        %v2007 = vpop.f32.mrb[0].mxu0
        %v2008 = vadd.f32 %v1904, %v2007
        %v2009 = vpop.f32.mrb[0].mxu0
        %2010 = vmatprep.mubr.bf16.mxu0 0
        %2011 = vmatmul.mubr.bf16.gmra.mrb[0].mxu0 %v1870
        %v2012 = vpop.f32.mrb[0].mxu0
        %v2013 = vadd.f32 %v1904, %v2012
        %v2014 = vpop.f32.mrb[0].mxu0
        %v2015 = vpop.f32.mrb[0].mxu0
        %v2016 = vadd.f32 %v1904, %v2015
        %v2017 = vpop.f32.mrb[0].mxu0
        %2018 = vmatprep.mubr.bf16.mxu0 0
        %2019 = vmatmul.mubr.bf16.gmra.mrb[0].mxu0 %v1871
        %v2020 = vpop.f32.mrb[0].mxu0
        %v2021 = vadd.f32 %v1904, %v2020
        %v2022 = vpop.f32.mrb[0].mxu0
        %v2023 = vpop.f32.mrb[0].mxu0
        %v2024 = vadd.f32 %v1904, %v2023
        %v2025 = vpop.f32.mrb[0].mxu0
        %2026 = vmatprep.mubr.bf16.mxu0 0
        %2027 = vmatmul.mubr.bf16.gmra.mrb[0].mxu0 %v1872
        %v2028 = vpop.f32.mrb[0].mxu0
        %v2029 = vadd.f32 %v1904, %v2028
        %v2030 = vpop.f32.mrb[0].mxu0
        %v2031 = vpop.f32.mrb[0].mxu0
        %v2032 = vadd.f32 %v1904, %v2031
        %v2033 = vpop.f32.mrb[0].mxu0
        %2034 = vmatprep.mubr.bf16.mxu0 0
        %2035 = vmatmul.mubr.bf16.gmra.mrb[0].mxu0 %v1873
        %v2036 = vpop.f32.mrb[0].mxu0
        %v2037 = vadd.f32 %v1904, %v2036
        %v2038 = vpop.f32.mrb[0].mxu0
        %v2039 = vpop.f32.mrb[0].mxu0
        %v2040 = vadd.f32 %v1904, %v2039
        %v2041 = vpop.f32.mrb[0].mxu0
        %2042 = vmatprep.mubr.bf16.mxu0 0
        %2043 = vmatmul.mubr.bf16.gmra.mrb[0].mxu0 %v1874
        %v2044 = vpop.f32.mrb[0].mxu0
        %v2045 = vadd.f32 %v1904, %v2044
        %v2046 = vpop.f32.mrb[0].mxu0
        %v2047 = vpop.f32.mrb[0].mxu0
        %v2048 = vadd.f32 %v1904, %v2047
        %v2049 = vpop.f32.mrb[0].mxu0
        %2050 = vmatprep.mubr.bf16.mxu0 0
        %2051 = vmatmul.mubr.bf16.gmra.mrb[0].mxu0 %v1875
        %v2052 = vpop.f32.mrb[0].mxu0
        %v2053 = vadd.f32 %v1904, %v2052
        %v2054 = vpop.f32.mrb[0].mxu0
        %v2055 = vpop.f32.mrb[0].mxu0
        %v2056 = vadd.f32 %v1904, %v2055
        %v2057 = vpop.f32.mrb[0].mxu0
        %2058 = vmatprep.mubr.bf16.mxu0 0
        %2059 = vmatmul.mubr.bf16.gmra.mrb[0].mxu0 %v1876
        %v2060 = vpop.f32.mrb[0].mxu0
        %v2061 = vadd.f32 %v1904, %v2060
        %v2062 = vpop.f32.mrb[0].mxu0
        %v2063 = vpop.f32.mrb[0].mxu0
        %v2064 = vadd.f32 %v1904, %v2063
        %v2065 = vpop.f32.mrb[0].mxu0
        %2066 = vmatprep.mubr.bf16.mxu0 0
        %2067 = vmatmul.mubr.bf16.gmra.mrb[0].mxu0 %v1877
        %v2068 = vpop.f32.mrb[0].mxu0
        %v2069 = vadd.f32 %v1904, %v2068
        %v2070 = vpop.f32.mrb[0].mxu0
        %v2071 = vpop.f32.mrb[0].mxu0
        %v2072 = vadd.f32 %v1904, %v2071
        %v2073 = vpop.f32.mrb[0].mxu0
        %2074 = vmatprep.mubr.bf16.mxu0 0
        %2075 = vmatmul.mubr.bf16.gmra.mrb[0].mxu0 %v1878
        %v2076 = vpop.f32.mrb[0].mxu0
        %v2077 = vadd.f32 %v1904, %v2076
        %v2078 = vpop.f32.mrb[0].mxu0
        %v2079 = vpop.f32.mrb[0].mxu0
        %v2080 = vadd.f32 %v1904, %v2079
        %v2081 = vpop.f32.mrb[0].mxu0
        %2082 = vmatprep.mubr.bf16.mxu0 0
        %2083 = vmatmul.mubr.bf16.gmra.mrb[0].mxu0 %v1879
        %v2084 = vpop.f32.mrb[0].mxu0
        %v2085 = vadd.f32 %v1904, %v2084
        %v2086 = vpop.f32.mrb[0].mxu0
        %v2087 = vpop.f32.mrb[0].mxu0
        %v2088 = vadd.f32 %v1904, %v2087
        %v2089 = vpop.f32.mrb[0].mxu0
        %2090 = vmatprep.mubr.bf16.mxu0 0
        %2091 = vmatmul.mubr.bf16.gmra.mrb[0].mxu0 %v1880
        %v2092 = vpop.f32.mrb[0].mxu0
        %v2093 = vadd.f32 %v1904, %v2092
        %v2094 = vpop.f32.mrb[0].mxu0
        %v2095 = vpop.f32.mrb[0].mxu0
        %v2096 = vadd.f32 %v1904, %v2095
        %v2097 = vpop.f32.mrb[0].mxu0
        %2098 = vmatprep.mubr.bf16.mxu0 0
        %2099 = vmatmul.mubr.bf16.gmra.mrb[0].mxu0 %v1881
        %v2100 = vpop.f32.mrb[0].mxu0
        %v2101 = vadd.f32 %v1904, %v2100
        %v2102 = vpop.f32.mrb[0].mxu0
        %v2103 = vpop.f32.mrb[0].mxu0
        %v2104 = vadd.f32 %v1904, %v2103
        %v2105 = vpop.f32.mrb[0].mxu0
        %2106 = vmatprep.mubr.bf16.mxu0 0
        %2107 = vmatmul.mubr.bf16.gmra.mrb[0].mxu0 %v1882
        %v2108 = vpop.f32.mrb[0].mxu0
        %v2109 = vadd.f32 %v1904, %v2108
        %v2110 = vpop.f32.mrb[0].mxu0
        %v2111 = vpop.f32.mrb[0].mxu0
        %v2112 = vadd.f32 %v1904, %v2111
        %v2113 = vpop.f32.mrb[0].mxu0
        %2114 = vdwg.mxu0
        %v2115 = vmax.f32 %v1989, 0.0
        %v2116 = vmax.f32 %v1992, 0.0
        %v2117 = vmax.f32 %v1997, 0.0
        %v2118 = vmax.f32 %v2000, 0.0
        %v2119 = vmax.f32 %v2005, 0.0
        %v2120 = vmax.f32 %v2008, 0.0
        %v2121 = vmax.f32 %v2013, 0.0
        %v2122 = vmax.f32 %v2016, 0.0
        %v2123 = vmax.f32 %v2021, 0.0
        %v2124 = vmax.f32 %v2024, 0.0
        %v2125 = vmax.f32 %v2029, 0.0
        %v2126 = vmax.f32 %v2032, 0.0
        %v2127 = vmax.f32 %v2037, 0.0
        %v2128 = vmax.f32 %v2040, 0.0
        %v2129 = vmax.f32 %v2045, 0.0
        %v2130 = vmax.f32 %v2048, 0.0
        %v2131 = vmax.f32 %v2053, 0.0
        %v2132 = vmax.f32 %v2056, 0.0
        %v2133 = vmax.f32 %v2061, 0.0
        %v2134 = vmax.f32 %v2064, 0.0
        %v2135 = vmax.f32 %v2069, 0.0
        %v2136 = vmax.f32 %v2072, 0.0
        %v2137 = vmax.f32 %v2077, 0.0
        %v2138 = vmax.f32 %v2080, 0.0
        %v2139 = vmax.f32 %v2085, 0.0
        %v2140 = vmax.f32 %v2088, 0.0
        %v2141 = vmax.f32 %v2093, 0.0
        %v2142 = vmax.f32 %v2096, 0.0
        %v2143 = vmax.f32 %v2101, 0.0
        %v2144 = vmax.f32 %v2104, 0.0
        %v2145 = vmax.f32 %v2109, 0.0
        %v2146 = vmax.f32 %v2112, 0.0
        %2147 = vst [vmem:[%s406] sm:$0xff] %v2115
        %2148 = vst [vmem:[%s406 + $0x8] sm:$0xff] %v2116
        %2149 = vst [vmem:[%s406 + $0x10] sm:$0xff] %v2117
        %2150 = vst [vmem:[%s406 + $0x18] sm:$0xff] %v2118
        %2151 = vst [vmem:[%s406 + $0x20] sm:$0xff] %v2119
        %2152 = vst [vmem:[%s406 + $0x28] sm:$0xff] %v2120
        %2153 = vst [vmem:[%s406 + $0x30] sm:$0xff] %v2121
        %2154 = vst [vmem:[%s406 + $0x38] sm:$0xff] %v2122
        %2155 = vst [vmem:[%s406 + $0x40] sm:$0xff] %v2123
        %2156 = vst [vmem:[%s406 + $0x48] sm:$0xff] %v2124
        %2157 = vst [vmem:[%s406 + $0x50] sm:$0xff] %v2125
        %2158 = vst [vmem:[%s406 + $0x58] sm:$0xff] %v2126
        %2159 = vst [vmem:[%s406 + $0x60] sm:$0xff] %v2127
        %2160 = vst [vmem:[%s406 + $0x68] sm:$0xff] %v2128
        %2161 = vst [vmem:[%s406 + $0x70] sm:$0xff] %v2129
        %2162 = vst [vmem:[%s406 + $0x78] sm:$0xff] %v2130
        %2163 = vst [vmem:[%s406 + $0x80] sm:$0xff] %v2131
        %2164 = vst [vmem:[%s406 + $0x88] sm:$0xff] %v2132
        %2165 = vst [vmem:[%s406 + $0x90] sm:$0xff] %v2133
        %2166 = vst [vmem:[%s406 + $0x98] sm:$0xff] %v2134
        %2167 = vst [vmem:[%s406 + $0xa0] sm:$0xff] %v2135
        %2168 = vst [vmem:[%s406 + $0xa8] sm:$0xff] %v2136
        %2169 = vst [vmem:[%s406 + $0xb0] sm:$0xff] %v2137
        %2170 = vst [vmem:[%s406 + $0xb8] sm:$0xff] %v2138
        %2171 = vst [vmem:[%s406 + $0xc0] sm:$0xff] %v2139
        %2172 = vst [vmem:[%s406 + $0xc8] sm:$0xff] %v2140
        %2173 = vst [vmem:[%s406 + $0xd0] sm:$0xff] %v2141
        %2174 = vst [vmem:[%s406 + $0xd8] sm:$0xff] %v2142
        %2175 = vst [vmem:[%s406 + $0xe0] sm:$0xff] %v2143
        %2176 = vst [vmem:[%s406 + $0xe8] sm:$0xff] %v2144
        %2177 = vst [vmem:[%s406 + $0xf0] sm:$0xff] %v2145
        %2178 = vst [vmem:[%s406 + $0xf8] sm:$0xff] %v2146
        %s2179 = sand.u32 %s215, 1
        %s2180 = scalar_lea.sflag [#allocation4], %s2179
        %s2181 = sand.u32 %s215, 1
        %s2182 = smul.addr %s2181, 256
        %s2183 = scalar_lea.vmem [#allocation11], %s2182
        // Predicated region
        $region73: #{gcn2_forward.1} parent=51 // pred_check
          %p2184 = pneg %p225
        $region74: #{gcn2_forward.1} parent=51 // pred_check_branch
          %2186 = sbr.rel (%p2184) target = $region76
        $region75: #{gcn2_forward.1} parent=51 // pred_region
          %s2188 = ssub.s32 4096, 4096
          %2189 = vsyncadd %s2180, %s2188
          %s2190 = smul.addr %s29, 32
          %s2191 = smul.addr %s2190, 128
          %s2192 = scalar_lea.hbm %s8, %s2191
          %s2193 = sshll.u32 %s2183, 4
          %s2194 = int_to_ptr.vmem [resolvable:$true] %s2193
          %2199 = dma.vmem_to_hbm [thread:$0]  %s2194, 4096, %s2192, %s2180, 128, 128, 8
        $region76: #{gcn2_forward.1} parent=51 // pred_fallthru
          _
      $region52: #{gcn2_forward.1} parent=5 // pred_fallthru
        _
      %p2200 = scmp.le.s32.totalorder 2, %s24
      // Predicated region
      $region77: #{gcn2_forward.1} parent=5 // pred_check
        %p2201 = pneg %p2200
      $region78: #{gcn2_forward.1} parent=5 // pred_check_branch
        %2203 = sbr.rel (%p2201) target = $region80
      $region79: #{gcn2_forward.1} parent=5 // pred_region
        %s2204 = ssub.s32 %s24, 2
        // Predicated region
        $region81: #{gcn2_forward.1} parent=79 // pred_check
          %p2205 = pneg %p231
        $region82: #{gcn2_forward.1} parent=79 // pred_check_branch
          %2207 = sbr.rel (%p2205) target = $region84
        $region83: #{gcn2_forward.1} parent=79 // pred_region
          %s2208 = sand.u32 %s216, 1
          %s2209 = scalar_lea.sflag [#allocation4], %s2208
          %s2210 = sand.u32 %s216, 1
          %s2211 = smul.addr %s2210, 256
          %s2212 = scalar_lea.vmem [#allocation11], %s2211
          %2213 = dma.done %s2209, 4096
        $region84: #{gcn2_forward.1} parent=79 // pred_fallthru
          _
      $region80: #{gcn2_forward.1} parent=5 // pred_fallthru
        _
    $region6: #{gcn2_forward.1} parent=1 // loop_footer
      %s28 = sadd.s32 1, %s24
    $region7: #{gcn2_forward.1} parent=1 // loop_footer_branch
      %23 = sbr.rel target = $region3
    $region8: #{gcn2_forward.1} parent=1 // loop_exit
      _
    %2214 = vsyncpa [#allocation3], 1
    %s2215 = scalar_lea.sflag [#allocation3], 1
    %2216 = vsyncpa %s2215, 1
    %2217 = vsyncpa [#allocation6], 1
    %s2218 = scalar_lea.sflag [#allocation6], 1
    %2219 = vsyncpa %s2218, 1
    %2220 = vsyncpa [#allocation9], 1
    %2221 = vsyncpa [#allocation4], 1
    %s2222 = scalar_lea.sflag [#allocation4], 1
    %2223 = vsyncpa %s2222, 1

</llo_original>
